<compile_context>
chip_gen: v6e
topology: v6e:2x2x1
jax: 0.10.0
libtpu: 0.0.40
codegen_flags: <defaults>
</compile_context>

<pallas_src>
import numpy as np

import jax
import jax.numpy as jnp
from jax.experimental import pallas as pl
from jax.experimental.pallas import tpu as pltpu


_BLOCK_N = 128  # batch rows per grid step (M of every matmul)


def _round_up(x, m):
    return ((x + m - 1) // m) * m


# ----------------------------------------------------------------------------
# Fused Pallas kernel: conv1 -> relu -> conv2 -> relu -> fc_mu -> critic MLP
# ----------------------------------------------------------------------------
def _vae_critic_kernel(x_ref, w1_ref, b1_ref, w2_ref, b2_ref, wmu_ref, bmu_ref,
                       wh1_ref, bh1_ref, wh2_ref, bh2_ref, wv_ref, bv_ref,
                       o_ref):
    f32 = jnp.float32
    bf16 = jnp.bfloat16

    # Input block: (bn, C*H*W) f32, cast in-kernel (cheaper than a separate
    # XLA convert pass which would add an HBM round-trip).
    x = x_ref[...].astype(bf16)

    # conv1 (3x3, s=2, p=1) + ReLU as one banded matmul.
    y = jnp.dot(x, w1_ref[...], preferred_element_type=f32) + b1_ref[...]
    y = jnp.maximum(y, 0.0).astype(bf16)

    # conv2 (3x3, s=2, p=1) + ReLU as one banded matmul.
    y = jnp.dot(y, w2_ref[...], preferred_element_type=f32) + b2_ref[...]
    y = jnp.maximum(y, 0.0).astype(bf16)

    # fc_mu latent projection (NCHW flatten folded into the weight layout).
    lat = jnp.dot(y, wmu_ref[...], preferred_element_type=f32) + bmu_ref[...]

    # Critic MLP: tanh -> tanh -> linear(1).
    h = jnp.tanh(jnp.dot(lat.astype(bf16), wh1_ref[...],
                         preferred_element_type=f32) + bh1_ref[...])
    h = jnp.tanh(jnp.dot(h.astype(bf16), wh2_ref[...],
                         preferred_element_type=f32) + bh2_ref[...])
    # Final (hidden -> 1): VPU multiply + lane reduce (avoid N=1 MXU matmul).
    v = jnp.sum(h * wv_ref[...], axis=-1, keepdims=True) + bv_ref[...]
    o_ref[...] = v.astype(o_ref.dtype)


# ----------------------------------------------------------------------------
# One-time weight preparation (fold conv taps / padding / flatten permutation)
# ----------------------------------------------------------------------------
def prepare_kernel_params(params, obs_dim):
    """Build kernel-layout weights from PyTorch-layout params (one-time)."""
    C, H, W = obs_dim
    Ho, Wo = (H + 1) // 2, (W + 1) // 2        # conv k=3, s=2, p=1
    Ho2, Wo2 = (Ho + 1) // 2, (Wo + 1) // 2

    w1 = np.asarray(params["conv1_w"], np.float32)     # (C1, C, 3, 3)
    w2 = np.asarray(params["conv2_w"], np.float32)     # (C2, C1, 3, 3)
    assert w1.shape[2:] == (3, 3) and w2.shape[2:] == (3, 3)
    C1, C2 = w1.shape[0], w2.shape[0]

    # conv1 banded matrix over the raw NCHW flatten of the input:
    #   W1b[c*H*W + h*W + w, (oh*Wo + ow)*C1 + co] = w1[co, c, i, j]
    # with h = 2*oh + i - 1, w = 2*ow + j - 1; out-of-range taps are dropped
    # (that IS the zero padding).
    W1b = np.zeros((C * H * W, Ho * Wo * C1), np.float32)
    for oh in range(Ho):
        for ow in range(Wo):
            col0 = (oh * Wo + ow) * C1
            for i in range(3):
                h = 2 * oh + i - 1
                if not (0 <= h < H):
                    continue
                for j in range(3):
                    w = 2 * ow + j - 1
                    if not (0 <= w < W):
                        continue
                    rows = np.arange(C) * (H * W) + h * W + w
                    W1b[rows, col0:col0 + C1] = w1[:, :, i, j].T      # (C, C1)
    b1 = np.tile(np.asarray(params["conv1_b"], np.float32), Ho * Wo)[None, :]

    # conv2 banded matrix; its input lanes are conv1's output lanes
    # ((oh, ow, c1), channel fastest), output lanes (oh2, ow2, c2).
    W2b = np.zeros((Ho * Wo * C1, Ho2 * Wo2 * C2), np.float32)
    for oh2 in range(Ho2):
        for ow2 in range(Wo2):
            col0 = (oh2 * Wo2 + ow2) * C2
            for i in range(3):
                h = 2 * oh2 + i - 1
                if not (0 <= h < Ho):
                    continue
                for j in range(3):
                    w = 2 * ow2 + j - 1
                    if not (0 <= w < Wo):
                        continue
                    row0 = (h * Wo + w) * C1
                    W2b[row0:row0 + C1, col0:col0 + C2] = w2[:, :, i, j].T
    b2 = np.tile(np.asarray(params["conv2_b"], np.float32), Ho2 * Wo2)[None, :]

    # fc_mu: PyTorch flattens NCHW (index c2*Ho2*Wo2 + h2*Wo2 + w2); our lanes
    # are (h2, w2, c2) with channel fastest -> permute the weight rows once.
    wmu = np.asarray(params["fc_mu_w"], np.float32)     # (C2*Ho2*Wo2, L)
    L = wmu.shape[1]
    wmu_p = (wmu.reshape(C2, Ho2, Wo2, L)
                .transpose(1, 2, 0, 3)
                .reshape(Ho2 * Wo2 * C2, L))

    def f32row(a):
        return jnp.asarray(np.asarray(a, np.float32).reshape(1, -1))

    return {
        "w1": jnp.asarray(W1b, jnp.bfloat16),
        "b1": jnp.asarray(b1),
        "w2": jnp.asarray(W2b, jnp.bfloat16),
        "b2": jnp.asarray(b2),
        "wmu": jnp.asarray(wmu_p, jnp.bfloat16),
        "bmu": f32row(params["fc_mu_b"]),
        "wh1": jnp.asarray(np.asarray(params["mlp_w1"], np.float32),
                           jnp.bfloat16),
        "bh1": f32row(params["mlp_b1"]),
        "wh2": jnp.asarray(np.asarray(params["mlp_w2"], np.float32),
                           jnp.bfloat16),
        "bh2": f32row(params["mlp_b2"]),
        # final projection stored transposed as a row for VPU mul + reduce
        "wv": f32row(np.asarray(params["mlp_w3"], np.float32).T),
        "bv": f32row(params["mlp_b3"]),
    }


# ----------------------------------------------------------------------------
# Forward wrapper (single fused pallas_call)
# ----------------------------------------------------------------------------
def vae_critic_forward(kp, obs):
    """obs: (N, C, H, W) float32 -> value (N,) float32."""
    N, C, H, W = obs.shape
    CHW = C * H * W

    bn = int(min(_BLOCK_N, _round_up(N, 8)))
    G = -(-N // bn)
    Npad = G * bn

    x = obs.reshape(N, CHW)                       # free reshape (contiguous)
    if Npad != N:
        x = jnp.pad(x, ((0, Npad - N), (0, 0)))

    out = pl.pallas_call(
        _vae_critic_kernel,
        out_shape=jax.ShapeDtypeStruct((Npad, 1), jnp.float32),
        grid_spec=pltpu.PrefetchScalarGridSpec(
            num_scalar_prefetch=0,
            grid=(G,),
            in_specs=[
                pl.BlockSpec((bn, CHW), lambda g: (g, 0)),
                pl.BlockSpec(kp["w1"].shape, lambda g: (0, 0)),
                pl.BlockSpec(kp["b1"].shape, lambda g: (0, 0)),
                pl.BlockSpec(kp["w2"].shape, lambda g: (0, 0)),
                pl.BlockSpec(kp["b2"].shape, lambda g: (0, 0)),
                pl.BlockSpec(kp["wmu"].shape, lambda g: (0, 0)),
                pl.BlockSpec(kp["bmu"].shape, lambda g: (0, 0)),
                pl.BlockSpec(kp["wh1"].shape, lambda g: (0, 0)),
                pl.BlockSpec(kp["bh1"].shape, lambda g: (0, 0)),
                pl.BlockSpec(kp["wh2"].shape, lambda g: (0, 0)),
                pl.BlockSpec(kp["bh2"].shape, lambda g: (0, 0)),
                pl.BlockSpec(kp["wv"].shape, lambda g: (0, 0)),
                pl.BlockSpec(kp["bv"].shape, lambda g: (0, 0)),
            ],
            out_specs=pl.BlockSpec((bn, 1), lambda g: (g, 0)),
        ),
        compiler_params=pltpu.CompilerParams(
            dimension_semantics=("parallel",),
        ),
    )(x, kp["w1"], kp["b1"], kp["w2"], kp["b2"], kp["wmu"], kp["bmu"],
      kp["wh1"], kp["bh1"], kp["wh2"], kp["bh2"], kp["wv"], kp["bv"])

    return out[:N, 0]


# ----------------------------------------------------------------------------
# Parameter construction (PyTorch layouts) and pure-JAX reference
# ----------------------------------------------------------------------------
def init_vae_critic_params(key, obs_dim=(4, 16, 16), latent_dim=32,
                           hidden_sizes=(32, 32)):
    C, H, W = obs_dim
    ks = jax.random.split(key, 6)

    def dense_init(k, fan_in, shape):
        return jax.random.normal(k, shape, jnp.float32) / jnp.sqrt(fan_in)

    params = {}
    # VAE encoder: two strided convs + fc_mu
    params["conv1_w"] = dense_init(ks[0], C * 9, (8, C, 3, 3))   # (Cout,Cin,3,3)
    params["conv1_b"] = jnp.zeros((8,), jnp.float32)
    params["conv2_w"] = dense_init(ks[1], 8 * 9, (16, 8, 3, 3))
    params["conv2_b"] = jnp.zeros((16,), jnp.float32)
    flat = 16 * (H // 4) * (W // 4)                              # NCHW flatten
    params["fc_mu_w"] = dense_init(ks[2], flat, (flat, latent_dim))
    params["fc_mu_b"] = jnp.zeros((latent_dim,), jnp.float32)
    # Critic MLP: [latent] + hidden_sizes + [1], tanh activations
    h1, h2 = hidden_sizes
    params["mlp_w1"] = dense_init(ks[3], latent_dim, (latent_dim, h1))
    params["mlp_b1"] = jnp.zeros((h1,), jnp.float32)
    params["mlp_w2"] = dense_init(ks[4], h1, (h1, h2))
    params["mlp_b2"] = jnp.zeros((h2,), jnp.float32)
    params["mlp_w3"] = dense_init(ks[5], h2, (h2, 1))
    params["mlp_b3"] = jnp.zeros((1,), jnp.float32)
    return params


def reference_forward(params, obs):
    """Pure-JAX (non-Pallas) reference with identical semantics."""
    y = jax.lax.conv_general_dilated(
        obs, params["conv1_w"], window_strides=(2, 2),
        padding=((1, 1), (1, 1)),
        dimension_numbers=("NCHW", "OIHW", "NCHW"))
    y = jax.nn.relu(y + params["conv1_b"][None, :, None, None])
    y = jax.lax.conv_general_dilated(
        y, params["conv2_w"], window_strides=(2, 2),
        padding=((1, 1), (1, 1)),
        dimension_numbers=("NCHW", "OIHW", "NCHW"))
    y = jax.nn.relu(y + params["conv2_b"][None, :, None, None])
    feat = y.reshape(y.shape[0], -1)                             # NCHW flatten
    lat = feat @ params["fc_mu_w"] + params["fc_mu_b"]
    h = jnp.tanh(lat @ params["mlp_w1"] + params["mlp_b1"])
    h = jnp.tanh(h @ params["mlp_w2"] + params["mlp_b2"])
    v = h @ params["mlp_w3"] + params["mlp_b3"]
    return jnp.squeeze(v, -1)


if __name__ == "__main__":
    key = jax.random.PRNGKey(0)
    k_param, k_obs = jax.random.split(key)

    obs_dim = (4, 16, 16)                      # (C, H, W)
    batch = 2
    params = init_vae_critic_params(k_param, obs_dim=obs_dim,
                                    latent_dim=32, hidden_sizes=(32, 32))
    obs = jax.random.normal(k_obs, (batch,) + obs_dim, jnp.float32)

    kparams = prepare_kernel_params(params, obs_dim)   # one-time weight prep
    fwd = jax.jit(vae_critic_forward)

    v = jax.block_until_ready(fwd(kparams, obs))
    assert v.shape == (batch,), v.shape
    assert v.dtype == jnp.float32

    # Numerical sanity check vs. the pure-JAX reference (bf16 MXU operands,
    # f32 accumulation => loose tolerance).
    v_ref = jax.block_until_ready(reference_forward(params, obs))
    assert jnp.allclose(v, v_ref, atol=5e-2, rtol=5e-2), (v, v_ref)

    print("KERNEL_OK")
</pallas_src>

<mosaic_0001>
module attributes {stable_mosaic.version = 11 : i64} {
  func.func @_vae_critic_kernel(%arg0: i32, %arg1: memref<8x1024xf32, #tpu.memory_space<vmem>>, %arg2: memref<1024x512xbf16, #tpu.memory_space<vmem>>, %arg3: memref<1x512xf32, #tpu.memory_space<vmem>>, %arg4: memref<512x256xbf16, #tpu.memory_space<vmem>>, %arg5: memref<1x256xf32, #tpu.memory_space<vmem>>, %arg6: memref<256x32xbf16, #tpu.memory_space<vmem>>, %arg7: memref<1x32xf32, #tpu.memory_space<vmem>>, %arg8: memref<32x32xbf16, #tpu.memory_space<vmem>>, %arg9: memref<1x32xf32, #tpu.memory_space<vmem>>, %arg10: memref<32x32xbf16, #tpu.memory_space<vmem>>, %arg11: memref<1x32xf32, #tpu.memory_space<vmem>>, %arg12: memref<1x32xf32, #tpu.memory_space<vmem>>, %arg13: memref<1x1xf32, #tpu.memory_space<vmem>>, %arg14: memref<8x1xf32, #tpu.memory_space<vmem>>) attributes {dimension_semantics = [#tpu.dimension_semantics<parallel>], iteration_bounds = array<i64: 1>, scalar_prefetch = 0 : i64, scratch_operands = 0 : i64, tpu.core_type = #tpu.core_type<tc>, window_params = [{transform_indices = @transform_0, window_bounds = array<i64: 8, 1024>}, {pipeline_mode = #tpu.pipeline_mode<synchronous>, transform_indices = @transform_1, window_bounds = array<i64: 1024, 512>}, {pipeline_mode = #tpu.pipeline_mode<synchronous>, transform_indices = @transform_2, window_bounds = array<i64: 1, 512>}, {pipeline_mode = #tpu.pipeline_mode<synchronous>, transform_indices = @transform_3, window_bounds = array<i64: 512, 256>}, {pipeline_mode = #tpu.pipeline_mode<synchronous>, transform_indices = @transform_4, window_bounds = array<i64: 1, 256>}, {pipeline_mode = #tpu.pipeline_mode<synchronous>, transform_indices = @transform_5, window_bounds = array<i64: 256, 32>}, {pipeline_mode = #tpu.pipeline_mode<synchronous>, transform_indices = @transform_6, window_bounds = array<i64: 1, 32>}, {pipeline_mode = #tpu.pipeline_mode<synchronous>, transform_indices = @transform_7, window_bounds = array<i64: 32, 32>}, {pipeline_mode = #tpu.pipeline_mode<synchronous>, transform_indices = @transform_8, window_bounds = array<i64: 1, 32>}, {pipeline_mode = #tpu.pipeline_mode<synchronous>, transform_indices = @transform_9, window_bounds = array<i64: 32, 32>}, {pipeline_mode = #tpu.pipeline_mode<synchronous>, transform_indices = @transform_10, window_bounds = array<i64: 1, 32>}, {pipeline_mode = #tpu.pipeline_mode<synchronous>, transform_indices = @transform_11, window_bounds = array<i64: 1, 32>}, {pipeline_mode = #tpu.pipeline_mode<synchronous>, transform_indices = @transform_12, window_bounds = array<i64: 1, 1>}, {transform_indices = @transform_13, window_bounds = array<i64: 8, 1>}]} {
    %c0 = arith.constant 0 : index
    %c0_0 = arith.constant 0 : index
    %0 = vector.load %arg1[%c0, %c0_0] : memref<8x1024xf32, #tpu.memory_space<vmem>>, vector<8x1024xf32>
    %1 = arith.truncf %0 : vector<8x1024xf32> to vector<8x1024xbf16>
    %c0_1 = arith.constant 0 : index
    %c0_2 = arith.constant 0 : index
    %2 = vector.load %arg2[%c0_1, %c0_2] : memref<1024x512xbf16, #tpu.memory_space<vmem>>, vector<1024x512xbf16>
    %cst = arith.constant dense<0.000000e+00> : vector<8x512xf32>
    %3 = tpu.matmul %1, %2, %cst {dimension_numbers = #tpu.dot_dimension_numbers<[1], [0], [0], [1], [0, 0, 1, 1], [], []>} : vector<8x1024xbf16>, vector<1024x512xbf16>, vector<8x512xf32> -> vector<8x512xf32>
    %c0_3 = arith.constant 0 : index
    %c0_4 = arith.constant 0 : index
    %4 = vector.load %arg3[%c0_3, %c0_4] : memref<1x512xf32, #tpu.memory_space<vmem>>, vector<1x512xf32>
    %5 = vector.broadcast %4 : vector<1x512xf32> to vector<8x512xf32>
    %6 = arith.addf %3, %5 : vector<8x512xf32>
    %cst_5 = arith.constant 0.000000e+00 : f32
    %7 = vector.broadcast %cst_5 : f32 to vector<8x512xf32>
    %8 = arith.maximumf %6, %7 : vector<8x512xf32>
    %9 = arith.truncf %8 : vector<8x512xf32> to vector<8x512xbf16>
    %c0_6 = arith.constant 0 : index
    %c0_7 = arith.constant 0 : index
    %10 = vector.load %arg4[%c0_6, %c0_7] : memref<512x256xbf16, #tpu.memory_space<vmem>>, vector<512x256xbf16>
    %cst_8 = arith.constant dense<0.000000e+00> : vector<8x256xf32>
    %11 = tpu.matmul %9, %10, %cst_8 {dimension_numbers = #tpu.dot_dimension_numbers<[1], [0], [0], [1], [0, 0, 1, 1], [], []>} : vector<8x512xbf16>, vector<512x256xbf16>, vector<8x256xf32> -> vector<8x256xf32>
    %c0_9 = arith.constant 0 : index
    %c0_10 = arith.constant 0 : index
    %12 = vector.load %arg5[%c0_9, %c0_10] : memref<1x256xf32, #tpu.memory_space<vmem>>, vector<1x256xf32>
    %13 = vector.broadcast %12 : vector<1x256xf32> to vector<8x256xf32>
    %14 = arith.addf %11, %13 : vector<8x256xf32>
    %cst_11 = arith.constant 0.000000e+00 : f32
    %15 = vector.broadcast %cst_11 : f32 to vector<8x256xf32>
    %16 = arith.maximumf %14, %15 : vector<8x256xf32>
    %17 = arith.truncf %16 : vector<8x256xf32> to vector<8x256xbf16>
    %c0_12 = arith.constant 0 : index
    %c0_13 = arith.constant 0 : index
    %18 = vector.load %arg6[%c0_12, %c0_13] : memref<256x32xbf16, #tpu.memory_space<vmem>>, vector<256x32xbf16>
    %cst_14 = arith.constant dense<0.000000e+00> : vector<8x32xf32>
    %19 = tpu.matmul %17, %18, %cst_14 {dimension_numbers = #tpu.dot_dimension_numbers<[1], [0], [0], [1], [0, 0, 1, 1], [], []>} : vector<8x256xbf16>, vector<256x32xbf16>, vector<8x32xf32> -> vector<8x32xf32>
    %c0_15 = arith.constant 0 : index
    %c0_16 = arith.constant 0 : index
    %20 = vector.load %arg7[%c0_15, %c0_16] : memref<1x32xf32, #tpu.memory_space<vmem>>, vector<1x32xf32>
    %21 = vector.broadcast %20 : vector<1x32xf32> to vector<8x32xf32>
    %22 = arith.addf %19, %21 : vector<8x32xf32>
    %23 = arith.truncf %22 : vector<8x32xf32> to vector<8x32xbf16>
    %c0_17 = arith.constant 0 : index
    %c0_18 = arith.constant 0 : index
    %24 = vector.load %arg8[%c0_17, %c0_18] : memref<32x32xbf16, #tpu.memory_space<vmem>>, vector<32x32xbf16>
    %cst_19 = arith.constant dense<0.000000e+00> : vector<8x32xf32>
    %25 = tpu.matmul %23, %24, %cst_19 {dimension_numbers = #tpu.dot_dimension_numbers<[1], [0], [0], [1], [0, 0, 1, 1], [], []>} : vector<8x32xbf16>, vector<32x32xbf16>, vector<8x32xf32> -> vector<8x32xf32>
    %c0_20 = arith.constant 0 : index
    %c0_21 = arith.constant 0 : index
    %26 = vector.load %arg9[%c0_20, %c0_21] : memref<1x32xf32, #tpu.memory_space<vmem>>, vector<1x32xf32>
    %27 = vector.broadcast %26 : vector<1x32xf32> to vector<8x32xf32>
    %28 = arith.addf %25, %27 : vector<8x32xf32>
    %29 = math.tanh %28 : vector<8x32xf32>
    %30 = arith.truncf %29 : vector<8x32xf32> to vector<8x32xbf16>
    %c0_22 = arith.constant 0 : index
    %c0_23 = arith.constant 0 : index
    %31 = vector.load %arg10[%c0_22, %c0_23] : memref<32x32xbf16, #tpu.memory_space<vmem>>, vector<32x32xbf16>
    %cst_24 = arith.constant dense<0.000000e+00> : vector<8x32xf32>
    %32 = tpu.matmul %30, %31, %cst_24 {dimension_numbers = #tpu.dot_dimension_numbers<[1], [0], [0], [1], [0, 0, 1, 1], [], []>} : vector<8x32xbf16>, vector<32x32xbf16>, vector<8x32xf32> -> vector<8x32xf32>
    %c0_25 = arith.constant 0 : index
    %c0_26 = arith.constant 0 : index
    %33 = vector.load %arg11[%c0_25, %c0_26] : memref<1x32xf32, #tpu.memory_space<vmem>>, vector<1x32xf32>
    %34 = vector.broadcast %33 : vector<1x32xf32> to vector<8x32xf32>
    %35 = arith.addf %32, %34 : vector<8x32xf32>
    %36 = math.tanh %35 : vector<8x32xf32>
    %c0_27 = arith.constant 0 : index
    %c0_28 = arith.constant 0 : index
    %37 = vector.load %arg12[%c0_27, %c0_28] : memref<1x32xf32, #tpu.memory_space<vmem>>, vector<1x32xf32>
    %38 = vector.broadcast %37 : vector<1x32xf32> to vector<8x32xf32>
    %39 = arith.mulf %36, %38 : vector<8x32xf32>
    %cst_29 = arith.constant dense<0.000000e+00> : vector<8xf32>
    %40 = vector.multi_reduction <add>, %39, %cst_29 [1] : vector<8x32xf32> to vector<8xf32>
    %41 = vector.shape_cast %40 : vector<8xf32> to vector<8x1xf32>
    %c0_30 = arith.constant 0 : index
    %c0_31 = arith.constant 0 : index
    %42 = vector.load %arg13[%c0_30, %c0_31] : memref<1x1xf32, #tpu.memory_space<vmem>>, vector<1x1xf32>
    %43 = vector.broadcast %42 : vector<1x1xf32> to vector<8x1xf32>
    %44 = arith.addf %41, %43 : vector<8x1xf32>
    %c0_32 = arith.constant 0 : index
    %c0_33 = arith.constant 0 : index
    %45 = vector.load %arg14[%c0_32, %c0_33] : memref<8x1xf32, #tpu.memory_space<vmem>>, vector<8x1xf32>
    tpu.vector_store %arg14[%c0_32, %c0_33], %44 {strides = array<i32>} : memref<8x1xf32, #tpu.memory_space<vmem>>, vector<8x1xf32>,
    return
  }
  func.func @transform_0(%arg0: i32) -> (i32, i32) {
    %c0_i32 = arith.constant 0 : i32
    %c0_i32_0 = arith.constant 0 : i32
    return %arg0, %c0_i32 : i32, i32
  }
  func.func @transform_1(%arg0: i32) -> (i32, i32) {
    %c0_i32 = arith.constant 0 : i32
    %c0_i32_0 = arith.constant 0 : i32
    %c0_i32_1 = arith.constant 0 : i32
    return %c0_i32, %c0_i32_0 : i32, i32
  }
  func.func @transform_2(%arg0: i32) -> (i32, i32) {
    %c0_i32 = arith.constant 0 : i32
    %c0_i32_0 = arith.constant 0 : i32
    %c0_i32_1 = arith.constant 0 : i32
    return %c0_i32, %c0_i32_0 : i32, i32
  }
  func.func @transform_3(%arg0: i32) -> (i32, i32) {
    %c0_i32 = arith.constant 0 : i32
    %c0_i32_0 = arith.constant 0 : i32
    %c0_i32_1 = arith.constant 0 : i32
    return %c0_i32, %c0_i32_0 : i32, i32
  }
  func.func @transform_4(%arg0: i32) -> (i32, i32) {
    %c0_i32 = arith.constant 0 : i32
    %c0_i32_0 = arith.constant 0 : i32
    %c0_i32_1 = arith.constant 0 : i32
    return %c0_i32, %c0_i32_0 : i32, i32
  }
  func.func @transform_5(%arg0: i32) -> (i32, i32) {
    %c0_i32 = arith.constant 0 : i32
    %c0_i32_0 = arith.constant 0 : i32
    %c0_i32_1 = arith.constant 0 : i32
    return %c0_i32, %c0_i32_0 : i32, i32
  }
  func.func @transform_6(%arg0: i32) -> (i32, i32) {
    %c0_i32 = arith.constant 0 : i32
    %c0_i32_0 = arith.constant 0 : i32
    %c0_i32_1 = arith.constant 0 : i32
    return %c0_i32, %c0_i32_0 : i32, i32
  }
  func.func @transform_7(%arg0: i32) -> (i32, i32) {
    %c0_i32 = arith.constant 0 : i32
    %c0_i32_0 = arith.constant 0 : i32
    %c0_i32_1 = arith.constant 0 : i32
    return %c0_i32, %c0_i32_0 : i32, i32
  }
  func.func @transform_8(%arg0: i32) -> (i32, i32) {
    %c0_i32 = arith.constant 0 : i32
    %c0_i32_0 = arith.constant 0 : i32
    %c0_i32_1 = arith.constant 0 : i32
    return %c0_i32, %c0_i32_0 : i32, i32
  }
  func.func @transform_9(%arg0: i32) -> (i32, i32) {
    %c0_i32 = arith.constant 0 : i32
    %c0_i32_0 = arith.constant 0 : i32
    %c0_i32_1 = arith.constant 0 : i32
    return %c0_i32, %c0_i32_0 : i32, i32
  }
  func.func @transform_10(%arg0: i32) -> (i32, i32) {
    %c0_i32 = arith.constant 0 : i32
    %c0_i32_0 = arith.constant 0 : i32
    %c0_i32_1 = arith.constant 0 : i32
    return %c0_i32, %c0_i32_0 : i32, i32
  }
  func.func @transform_11(%arg0: i32) -> (i32, i32) {
    %c0_i32 = arith.constant 0 : i32
    %c0_i32_0 = arith.constant 0 : i32
    %c0_i32_1 = arith.constant 0 : i32
    return %c0_i32, %c0_i32_0 : i32, i32
  }
  func.func @transform_12(%arg0: i32) -> (i32, i32) {
    %c0_i32 = arith.constant 0 : i32
    %c0_i32_0 = arith.constant 0 : i32
    %c0_i32_1 = arith.constant 0 : i32
    return %c0_i32, %c0_i32_0 : i32, i32
  }
  func.func @transform_13(%arg0: i32) -> (i32, i32) {
    %c0_i32 = arith.constant 0 : i32
    %c0_i32_0 = arith.constant 0 : i32
    return %arg0, %c0_i32 : i32, i32
  }
}

</mosaic_0001>

<llo_original>
// kernel: vae_critic_forward.1
$region0: #{vae_critic_forward.1}
  #allocation0 [shape = 'u32[]', space=smem, size = 0x4, offset = 0x4, fixed_abs, tag = 'smem constant byte address 0x4 - core index']
  #allocation1 [shape = 'u32[144,128]{1,0:T(1,128)}', space=vmem, size = 0x12000, scoped, tag = 'internal scratch']
  #allocation2 [shape = 'f32[1,1]{1,0:T(1,128)S(1)}', space=vmem, size = 0x200, scoped, tag = 'scoped memory for vae_critic_forward.1']
  %s0 = inlined_call_operand.vmem [shape: f32[8,1024], index: 0, kind: input, shape index: {}]
  %s1 = inlined_call_operand.hbm [shape: bf16[1024,512], index: 1, kind: input, shape index: {}]
  %s2 = inlined_call_operand.vmem [shape: f32[1,512], index: 2, kind: input, shape index: {}]
  %s3 = inlined_call_operand.hbm [shape: bf16[512,256], index: 3, kind: input, shape index: {}]
  %s4 = inlined_call_operand.vmem [shape: f32[1,256], index: 4, kind: input, shape index: {}]
  %s5 = inlined_call_operand.vmem [shape: bf16[256,32], index: 5, kind: input, shape index: {}]
  %s6 = inlined_call_operand.vmem [shape: f32[1,32], index: 6, kind: input, shape index: {}]
  %s7 = inlined_call_operand.vmem [shape: bf16[32,32], index: 7, kind: input, shape index: {}]
  %s8 = inlined_call_operand.vmem [shape: f32[1,32], index: 8, kind: input, shape index: {}]
  %s9 = inlined_call_operand.vmem [shape: bf16[32,32], index: 9, kind: input, shape index: {}]
  %s10 = inlined_call_operand.vmem [shape: f32[1,32], index: 10, kind: input, shape index: {}]
  %s11 = inlined_call_operand.vmem [shape: f32[1,32], index: 11, kind: input, shape index: {}]
  %s12 = inlined_call_operand.<no memory space> [shape: f32[1,1], index: 12, kind: input, shape index: {}]
  %s13 = inlined_call_operand.vmem [shape: f32[8,1], index: 13, kind: output, shape index: {}]
  %s14 = sld [smem:[#allocation0]]
  $region70: #{vae_critic_forward.1} parent=0
    _
  %s16 = ssub.s32 1, %s14
  %s17 = scalar_select 0, %s16, %s14
  %v18 = vstv %s12
  %19 = vst [vmem:[#allocation2] sm:$0x1] %v18
  $region1: #{vae_critic_forward.1} parent=0
    #allocation3 [shape = 'u8[1048576]{0}', space=vmem, size = 0x100000, scoped, tag = 'input window, operand 1, single buffered']
    #allocation4 [shape = 's32[1]{0}', space=sflag, size = 0x4, scoped, tag = 'scoped memory for vae_critic_forward.1']
    #allocation5 [shape = 'u8[262144]{0}', space=vmem, size = 0x40000, scoped, tag = 'input window, operand 3, single buffered']
    #allocation6 [shape = 's32[1]{0}', space=sflag, size = 0x4, scoped, tag = 'scoped memory for vae_critic_forward.1']
    %20 = vsyncpa [#allocation4], 0
    %21 = vsyncpa [#allocation6], 0
    // Predicated region
    $region2: #{vae_critic_forward.1} parent=1 // pred_check
      _
    $region3: #{vae_critic_forward.1} parent=1 // pred_check_branch
      %23 = sbr.rel (0) target = $region5
    $region4: #{vae_critic_forward.1} parent=1 // pred_region
      _
    $region5: #{vae_critic_forward.1} parent=1 // pred_fallthru
      _
    // Predicated region
    $region6: #{vae_critic_forward.1} parent=1 // pred_check
      _
    $region7: #{vae_critic_forward.1} parent=1 // pred_check_branch
      %25 = sbr.rel (0) target = $region9
    $region8: #{vae_critic_forward.1} parent=1 // pred_region
      %s27 = ssub.s32 32768, 32768
      %28 = vsyncadd [#allocation4], %s27
      %s29 = sshll.u32 [#allocation3], 4
      %s30 = int_to_ptr.vmem [resolvable:$true] %s29
      %35 = dma.hbm_to_vmem [thread:$0]  %s1, 32768, %s30, [#allocation4], 256, 256, 16
    $region9: #{vae_critic_forward.1} parent=1 // pred_fallthru
      _
    // Predicated region
    $region10: #{vae_critic_forward.1} parent=1 // pred_check
      _
    $region11: #{vae_critic_forward.1} parent=1 // pred_check_branch
      %37 = sbr.rel (0) target = $region13
    $region12: #{vae_critic_forward.1} parent=1 // pred_region
      _
    $region13: #{vae_critic_forward.1} parent=1 // pred_fallthru
      _
    // Predicated region
    $region14: #{vae_critic_forward.1} parent=1 // pred_check
      _
    $region15: #{vae_critic_forward.1} parent=1 // pred_check_branch
      %39 = sbr.rel (0) target = $region17
    $region16: #{vae_critic_forward.1} parent=1 // pred_region
      %s41 = ssub.s32 8192, 8192
      %42 = vsyncadd [#allocation6], %s41
      %s43 = sshll.u32 [#allocation5], 4
      %s44 = int_to_ptr.vmem [resolvable:$true] %s43
      %49 = dma.hbm_to_vmem [thread:$0]  %s3, 8192, %s44, [#allocation6], 128, 128, 8
    $region17: #{vae_critic_forward.1} parent=1 // pred_fallthru
      _
    // Predicated region
    $region18: #{vae_critic_forward.1} parent=1 // pred_check
      _
    $region19: #{vae_critic_forward.1} parent=1 // pred_check_branch
      %51 = sbr.rel (0) target = $region21
    $region20: #{vae_critic_forward.1} parent=1 // pred_region
      _
    $region21: #{vae_critic_forward.1} parent=1 // pred_fallthru
      _
    // Predicated region
    $region22: #{vae_critic_forward.1} parent=1 // pred_check
      _
    $region23: #{vae_critic_forward.1} parent=1 // pred_check_branch
      %53 = sbr.rel (0) target = $region25
    $region24: #{vae_critic_forward.1} parent=1 // pred_region
      _
    $region25: #{vae_critic_forward.1} parent=1 // pred_fallthru
      _
    // Predicated region
    $region26: #{vae_critic_forward.1} parent=1 // pred_check
      _
    $region27: #{vae_critic_forward.1} parent=1 // pred_check_branch
      %55 = sbr.rel (0) target = $region29
    $region28: #{vae_critic_forward.1} parent=1 // pred_region
      _
    $region29: #{vae_critic_forward.1} parent=1 // pred_fallthru
      _
    // Predicated region
    $region30: #{vae_critic_forward.1} parent=1 // pred_check
      _
    $region31: #{vae_critic_forward.1} parent=1 // pred_check_branch
      %57 = sbr.rel (0) target = $region33
    $region32: #{vae_critic_forward.1} parent=1 // pred_region
      _
    $region33: #{vae_critic_forward.1} parent=1 // pred_fallthru
      _
    // Predicated region
    $region34: #{vae_critic_forward.1} parent=1 // pred_check
      _
    $region35: #{vae_critic_forward.1} parent=1 // pred_check_branch
      %59 = sbr.rel (0) target = $region37
    $region36: #{vae_critic_forward.1} parent=1 // pred_region
      _
    $region37: #{vae_critic_forward.1} parent=1 // pred_fallthru
      _
    // Predicated region
    $region38: #{vae_critic_forward.1} parent=1 // pred_check
      _
    $region39: #{vae_critic_forward.1} parent=1 // pred_check_branch
      %61 = sbr.rel (0) target = $region41
    $region40: #{vae_critic_forward.1} parent=1 // pred_region
      _
    $region41: #{vae_critic_forward.1} parent=1 // pred_fallthru
      _
    // Predicated region
    $region42: #{vae_critic_forward.1} parent=1 // pred_check
      _
    $region43: #{vae_critic_forward.1} parent=1 // pred_check_branch
      %63 = sbr.rel (0) target = $region45
    $region44: #{vae_critic_forward.1} parent=1 // pred_region
      _
    $region45: #{vae_critic_forward.1} parent=1 // pred_fallthru
      _
    // Predicated region
    $region46: #{vae_critic_forward.1} parent=1 // pred_check
      _
    $region47: #{vae_critic_forward.1} parent=1 // pred_check_branch
      %65 = sbr.rel (0) target = $region49
    $region48: #{vae_critic_forward.1} parent=1 // pred_region
      _
    $region49: #{vae_critic_forward.1} parent=1 // pred_fallthru
      _
    // Predicated region
    $region50: #{vae_critic_forward.1} parent=1 // pred_check
      _
    $region51: #{vae_critic_forward.1} parent=1 // pred_check_branch
      %67 = sbr.rel (0) target = $region53
    $region52: #{vae_critic_forward.1} parent=1 // pred_region
      _
    $region53: #{vae_critic_forward.1} parent=1 // pred_fallthru
      _
    // Predicated region
    $region54: #{vae_critic_forward.1} parent=1 // pred_check
      _
    $region55: #{vae_critic_forward.1} parent=1 // pred_check_branch
      %69 = sbr.rel (0) target = $region57
    $region56: #{vae_critic_forward.1} parent=1 // pred_region
      %70 = dma.done [#allocation4], 32768
    $region57: #{vae_critic_forward.1} parent=1 // pred_fallthru
      _
    // Predicated region
    $region58: #{vae_critic_forward.1} parent=1 // pred_check
      _
    $region59: #{vae_critic_forward.1} parent=1 // pred_check_branch
      %72 = sbr.rel (0) target = $region61
    $region60: #{vae_critic_forward.1} parent=1 // pred_region
      %73 = dma.done [#allocation6], 8192
    $region61: #{vae_critic_forward.1} parent=1 // pred_fallthru
      _
    %v75 = vld [vmem:[%s0] sm:$0xff]
    %v76 = vld [vmem:[%s0 + $0x8] sm:$0xff]
    %v77 = vld [vmem:[%s0 + $0x10] sm:$0xff]
    %v78 = vld [vmem:[%s0 + $0x18] sm:$0xff]
    %v79 = vld [vmem:[%s0 + $0x20] sm:$0xff]
    %v80 = vld [vmem:[%s0 + $0x28] sm:$0xff]
    %v81 = vld [vmem:[%s0 + $0x30] sm:$0xff]
    %v82 = vld [vmem:[%s0 + $0x38] sm:$0xff]
    %v83 = vpack.c.bf16 %v75, %v75
    %v84 = vpack.c.bf16 %v76, %v76
    %v85 = vpack.c.bf16 %v77, %v77
    %v86 = vpack.c.bf16 %v78, %v78
    %v87 = vpack.c.bf16 %v79, %v79
    %v88 = vpack.c.bf16 %v80, %v80
    %v89 = vpack.c.bf16 %v81, %v81
    %v90 = vpack.c.bf16 %v82, %v82
    %v91 = vld [vmem:[#allocation3] sm:$0xff]
    %v92 = vld [vmem:[#allocation3 + $0x8] sm:$0xff]
    %v93 = vld [vmem:[#allocation3 + $0x10] sm:$0xff]
    %v94 = vld [vmem:[#allocation3 + $0x18] sm:$0xff]
    %v95 = vld [vmem:[#allocation3 + $0x20] sm:$0xff]
    %v96 = vld [vmem:[#allocation3 + $0x28] sm:$0xff]
    %v97 = vld [vmem:[#allocation3 + $0x30] sm:$0xff]
    %v98 = vld [vmem:[#allocation3 + $0x38] sm:$0xff]
    %v99 = vld [vmem:[#allocation3 + $0x40] sm:$0xff]
    %v100 = vld [vmem:[#allocation3 + $0x48] sm:$0xff]
    %v101 = vld [vmem:[#allocation3 + $0x50] sm:$0xff]
    %v102 = vld [vmem:[#allocation3 + $0x58] sm:$0xff]
    %v103 = vld [vmem:[#allocation3 + $0x60] sm:$0xff]
    %v104 = vld [vmem:[#allocation3 + $0x68] sm:$0xff]
    %v105 = vld [vmem:[#allocation3 + $0x70] sm:$0xff]
    %v106 = vld [vmem:[#allocation3 + $0x78] sm:$0xff]
    %v107 = vld [vmem:[#allocation3 + $0x80] sm:$0xff]
    %v108 = vld [vmem:[#allocation3 + $0x88] sm:$0xff]
    %v109 = vld [vmem:[#allocation3 + $0x90] sm:$0xff]
    %v110 = vld [vmem:[#allocation3 + $0x98] sm:$0xff]
    %v111 = vld [vmem:[#allocation3 + $0xa0] sm:$0xff]
    %v112 = vld [vmem:[#allocation3 + $0xa8] sm:$0xff]
    %v113 = vld [vmem:[#allocation3 + $0xb0] sm:$0xff]
    %v114 = vld [vmem:[#allocation3 + $0xb8] sm:$0xff]
    %v115 = vld [vmem:[#allocation3 + $0xc0] sm:$0xff]
    %v116 = vld [vmem:[#allocation3 + $0xc8] sm:$0xff]
    %v117 = vld [vmem:[#allocation3 + $0xd0] sm:$0xff]
    %v118 = vld [vmem:[#allocation3 + $0xd8] sm:$0xff]
    %v119 = vld [vmem:[#allocation3 + $0xe0] sm:$0xff]
    %v120 = vld [vmem:[#allocation3 + $0xe8] sm:$0xff]
    %v121 = vld [vmem:[#allocation3 + $0xf0] sm:$0xff]
    %v122 = vld [vmem:[#allocation3 + $0xf8] sm:$0xff]
    %v123 = vld [vmem:[#allocation3 + $0x100] sm:$0xff]
    %v124 = vld [vmem:[#allocation3 + $0x108] sm:$0xff]
    %v125 = vld [vmem:[#allocation3 + $0x110] sm:$0xff]
    %v126 = vld [vmem:[#allocation3 + $0x118] sm:$0xff]
    %v127 = vld [vmem:[#allocation3 + $0x120] sm:$0xff]
    %v128 = vld [vmem:[#allocation3 + $0x128] sm:$0xff]
    %v129 = vld [vmem:[#allocation3 + $0x130] sm:$0xff]
    %v130 = vld [vmem:[#allocation3 + $0x138] sm:$0xff]
    %v131 = vld [vmem:[#allocation3 + $0x140] sm:$0xff]
    %v132 = vld [vmem:[#allocation3 + $0x148] sm:$0xff]
    %v133 = vld [vmem:[#allocation3 + $0x150] sm:$0xff]
    %v134 = vld [vmem:[#allocation3 + $0x158] sm:$0xff]
    %v135 = vld [vmem:[#allocation3 + $0x160] sm:$0xff]
    %v136 = vld [vmem:[#allocation3 + $0x168] sm:$0xff]
    %v137 = vld [vmem:[#allocation3 + $0x170] sm:$0xff]
    %v138 = vld [vmem:[#allocation3 + $0x178] sm:$0xff]
    %v139 = vld [vmem:[#allocation3 + $0x180] sm:$0xff]
    %v140 = vld [vmem:[#allocation3 + $0x188] sm:$0xff]
    %v141 = vld [vmem:[#allocation3 + $0x190] sm:$0xff]
    %v142 = vld [vmem:[#allocation3 + $0x198] sm:$0xff]
    %v143 = vld [vmem:[#allocation3 + $0x1a0] sm:$0xff]
    %v144 = vld [vmem:[#allocation3 + $0x1a8] sm:$0xff]
    %v145 = vld [vmem:[#allocation3 + $0x1b0] sm:$0xff]
    %v146 = vld [vmem:[#allocation3 + $0x1b8] sm:$0xff]
    %v147 = vld [vmem:[#allocation3 + $0x1c0] sm:$0xff]
    %v148 = vld [vmem:[#allocation3 + $0x1c8] sm:$0xff]
    %v149 = vld [vmem:[#allocation3 + $0x1d0] sm:$0xff]
    %v150 = vld [vmem:[#allocation3 + $0x1d8] sm:$0xff]
    %v151 = vld [vmem:[#allocation3 + $0x1e0] sm:$0xff]
    %v152 = vld [vmem:[#allocation3 + $0x1e8] sm:$0xff]
    %v153 = vld [vmem:[#allocation3 + $0x1f0] sm:$0xff]
    %v154 = vld [vmem:[#allocation3 + $0x1f8] sm:$0xff]
    %v155 = vld [vmem:[#allocation3 + $0x200] sm:$0xff]
    %v156 = vld [vmem:[#allocation3 + $0x208] sm:$0xff]
    %v157 = vld [vmem:[#allocation3 + $0x210] sm:$0xff]
    %v158 = vld [vmem:[#allocation3 + $0x218] sm:$0xff]
    %v159 = vld [vmem:[#allocation3 + $0x220] sm:$0xff]
    %v160 = vld [vmem:[#allocation3 + $0x228] sm:$0xff]
    %v161 = vld [vmem:[#allocation3 + $0x230] sm:$0xff]
    %v162 = vld [vmem:[#allocation3 + $0x238] sm:$0xff]
    %v163 = vld [vmem:[#allocation3 + $0x240] sm:$0xff]
    %v164 = vld [vmem:[#allocation3 + $0x248] sm:$0xff]
    %v165 = vld [vmem:[#allocation3 + $0x250] sm:$0xff]
    %v166 = vld [vmem:[#allocation3 + $0x258] sm:$0xff]
    %v167 = vld [vmem:[#allocation3 + $0x260] sm:$0xff]
    %v168 = vld [vmem:[#allocation3 + $0x268] sm:$0xff]
    %v169 = vld [vmem:[#allocation3 + $0x270] sm:$0xff]
    %v170 = vld [vmem:[#allocation3 + $0x278] sm:$0xff]
    %v171 = vld [vmem:[#allocation3 + $0x280] sm:$0xff]
    %v172 = vld [vmem:[#allocation3 + $0x288] sm:$0xff]
    %v173 = vld [vmem:[#allocation3 + $0x290] sm:$0xff]
    %v174 = vld [vmem:[#allocation3 + $0x298] sm:$0xff]
    %v175 = vld [vmem:[#allocation3 + $0x2a0] sm:$0xff]
    %v176 = vld [vmem:[#allocation3 + $0x2a8] sm:$0xff]
    %v177 = vld [vmem:[#allocation3 + $0x2b0] sm:$0xff]
    %v178 = vld [vmem:[#allocation3 + $0x2b8] sm:$0xff]
    %v179 = vld [vmem:[#allocation3 + $0x2c0] sm:$0xff]
    %v180 = vld [vmem:[#allocation3 + $0x2c8] sm:$0xff]
    %v181 = vld [vmem:[#allocation3 + $0x2d0] sm:$0xff]
    %v182 = vld [vmem:[#allocation3 + $0x2d8] sm:$0xff]
    %v183 = vld [vmem:[#allocation3 + $0x2e0] sm:$0xff]
    %v184 = vld [vmem:[#allocation3 + $0x2e8] sm:$0xff]
    %v185 = vld [vmem:[#allocation3 + $0x2f0] sm:$0xff]
    %v186 = vld [vmem:[#allocation3 + $0x2f8] sm:$0xff]
    %v187 = vld [vmem:[#allocation3 + $0x300] sm:$0xff]
    %v188 = vld [vmem:[#allocation3 + $0x308] sm:$0xff]
    %v189 = vld [vmem:[#allocation3 + $0x310] sm:$0xff]
    %v190 = vld [vmem:[#allocation3 + $0x318] sm:$0xff]
    %v191 = vld [vmem:[#allocation3 + $0x320] sm:$0xff]
    %v192 = vld [vmem:[#allocation3 + $0x328] sm:$0xff]
    %v193 = vld [vmem:[#allocation3 + $0x330] sm:$0xff]
    %v194 = vld [vmem:[#allocation3 + $0x338] sm:$0xff]
    %v195 = vld [vmem:[#allocation3 + $0x340] sm:$0xff]
    %v196 = vld [vmem:[#allocation3 + $0x348] sm:$0xff]
    %v197 = vld [vmem:[#allocation3 + $0x350] sm:$0xff]
    %v198 = vld [vmem:[#allocation3 + $0x358] sm:$0xff]
    %v199 = vld [vmem:[#allocation3 + $0x360] sm:$0xff]
    %v200 = vld [vmem:[#allocation3 + $0x368] sm:$0xff]
    %v201 = vld [vmem:[#allocation3 + $0x370] sm:$0xff]
    %v202 = vld [vmem:[#allocation3 + $0x378] sm:$0xff]
    %v203 = vld [vmem:[#allocation3 + $0x380] sm:$0xff]
    %v204 = vld [vmem:[#allocation3 + $0x388] sm:$0xff]
    %v205 = vld [vmem:[#allocation3 + $0x390] sm:$0xff]
    %v206 = vld [vmem:[#allocation3 + $0x398] sm:$0xff]
    %v207 = vld [vmem:[#allocation3 + $0x3a0] sm:$0xff]
    %v208 = vld [vmem:[#allocation3 + $0x3a8] sm:$0xff]
    %v209 = vld [vmem:[#allocation3 + $0x3b0] sm:$0xff]
    %v210 = vld [vmem:[#allocation3 + $0x3b8] sm:$0xff]
    %v211 = vld [vmem:[#allocation3 + $0x3c0] sm:$0xff]
    %v212 = vld [vmem:[#allocation3 + $0x3c8] sm:$0xff]
    %v213 = vld [vmem:[#allocation3 + $0x3d0] sm:$0xff]
    %v214 = vld [vmem:[#allocation3 + $0x3d8] sm:$0xff]
    %v215 = vld [vmem:[#allocation3 + $0x3e0] sm:$0xff]
    %v216 = vld [vmem:[#allocation3 + $0x3e8] sm:$0xff]
    %v217 = vld [vmem:[#allocation3 + $0x3f0] sm:$0xff]
    %v218 = vld [vmem:[#allocation3 + $0x3f8] sm:$0xff]
    %v219 = vld [vmem:[#allocation3 + $0x400] sm:$0xff]
    %v220 = vld [vmem:[#allocation3 + $0x408] sm:$0xff]
    %v221 = vld [vmem:[#allocation3 + $0x410] sm:$0xff]
    %v222 = vld [vmem:[#allocation3 + $0x418] sm:$0xff]
    %v223 = vld [vmem:[#allocation3 + $0x420] sm:$0xff]
    %v224 = vld [vmem:[#allocation3 + $0x428] sm:$0xff]
    %v225 = vld [vmem:[#allocation3 + $0x430] sm:$0xff]
    %v226 = vld [vmem:[#allocation3 + $0x438] sm:$0xff]
    %v227 = vld [vmem:[#allocation3 + $0x440] sm:$0xff]
    %v228 = vld [vmem:[#allocation3 + $0x448] sm:$0xff]
    %v229 = vld [vmem:[#allocation3 + $0x450] sm:$0xff]
    %v230 = vld [vmem:[#allocation3 + $0x458] sm:$0xff]
    %v231 = vld [vmem:[#allocation3 + $0x460] sm:$0xff]
    %v232 = vld [vmem:[#allocation3 + $0x468] sm:$0xff]
    %v233 = vld [vmem:[#allocation3 + $0x470] sm:$0xff]
    %v234 = vld [vmem:[#allocation3 + $0x478] sm:$0xff]
    %v235 = vld [vmem:[#allocation3 + $0x480] sm:$0xff]
    %v236 = vld [vmem:[#allocation3 + $0x488] sm:$0xff]
    %v237 = vld [vmem:[#allocation3 + $0x490] sm:$0xff]
    %v238 = vld [vmem:[#allocation3 + $0x498] sm:$0xff]
    %v239 = vld [vmem:[#allocation3 + $0x4a0] sm:$0xff]
    %v240 = vld [vmem:[#allocation3 + $0x4a8] sm:$0xff]
    %v241 = vld [vmem:[#allocation3 + $0x4b0] sm:$0xff]
    %v242 = vld [vmem:[#allocation3 + $0x4b8] sm:$0xff]
    %v243 = vld [vmem:[#allocation3 + $0x4c0] sm:$0xff]
    %v244 = vld [vmem:[#allocation3 + $0x4c8] sm:$0xff]
    %v245 = vld [vmem:[#allocation3 + $0x4d0] sm:$0xff]
    %v246 = vld [vmem:[#allocation3 + $0x4d8] sm:$0xff]
    %v247 = vld [vmem:[#allocation3 + $0x4e0] sm:$0xff]
    %v248 = vld [vmem:[#allocation3 + $0x4e8] sm:$0xff]
    %v249 = vld [vmem:[#allocation3 + $0x4f0] sm:$0xff]
    %v250 = vld [vmem:[#allocation3 + $0x4f8] sm:$0xff]
    %v251 = vld [vmem:[#allocation3 + $0x500] sm:$0xff]
    %v252 = vld [vmem:[#allocation3 + $0x508] sm:$0xff]
    %v253 = vld [vmem:[#allocation3 + $0x510] sm:$0xff]
    %v254 = vld [vmem:[#allocation3 + $0x518] sm:$0xff]
    %v255 = vld [vmem:[#allocation3 + $0x520] sm:$0xff]
    %v256 = vld [vmem:[#allocation3 + $0x528] sm:$0xff]
    %v257 = vld [vmem:[#allocation3 + $0x530] sm:$0xff]
    %v258 = vld [vmem:[#allocation3 + $0x538] sm:$0xff]
    %v259 = vld [vmem:[#allocation3 + $0x540] sm:$0xff]
    %v260 = vld [vmem:[#allocation3 + $0x548] sm:$0xff]
    %v261 = vld [vmem:[#allocation3 + $0x550] sm:$0xff]
    %v262 = vld [vmem:[#allocation3 + $0x558] sm:$0xff]
    %v263 = vld [vmem:[#allocation3 + $0x560] sm:$0xff]
    %v264 = vld [vmem:[#allocation3 + $0x568] sm:$0xff]
    %v265 = vld [vmem:[#allocation3 + $0x570] sm:$0xff]
    %v266 = vld [vmem:[#allocation3 + $0x578] sm:$0xff]
    %v267 = vld [vmem:[#allocation3 + $0x580] sm:$0xff]
    %v268 = vld [vmem:[#allocation3 + $0x588] sm:$0xff]
    %v269 = vld [vmem:[#allocation3 + $0x590] sm:$0xff]
    %v270 = vld [vmem:[#allocation3 + $0x598] sm:$0xff]
    %v271 = vld [vmem:[#allocation3 + $0x5a0] sm:$0xff]
    %v272 = vld [vmem:[#allocation3 + $0x5a8] sm:$0xff]
    %v273 = vld [vmem:[#allocation3 + $0x5b0] sm:$0xff]
    %v274 = vld [vmem:[#allocation3 + $0x5b8] sm:$0xff]
    %v275 = vld [vmem:[#allocation3 + $0x5c0] sm:$0xff]
    %v276 = vld [vmem:[#allocation3 + $0x5c8] sm:$0xff]
    %v277 = vld [vmem:[#allocation3 + $0x5d0] sm:$0xff]
    %v278 = vld [vmem:[#allocation3 + $0x5d8] sm:$0xff]
    %v279 = vld [vmem:[#allocation3 + $0x5e0] sm:$0xff]
    %v280 = vld [vmem:[#allocation3 + $0x5e8] sm:$0xff]
    %v281 = vld [vmem:[#allocation3 + $0x5f0] sm:$0xff]
    %v282 = vld [vmem:[#allocation3 + $0x5f8] sm:$0xff]
    %v283 = vld [vmem:[#allocation3 + $0x600] sm:$0xff]
    %v284 = vld [vmem:[#allocation3 + $0x608] sm:$0xff]
    %v285 = vld [vmem:[#allocation3 + $0x610] sm:$0xff]
    %v286 = vld [vmem:[#allocation3 + $0x618] sm:$0xff]
    %v287 = vld [vmem:[#allocation3 + $0x620] sm:$0xff]
    %v288 = vld [vmem:[#allocation3 + $0x628] sm:$0xff]
    %v289 = vld [vmem:[#allocation3 + $0x630] sm:$0xff]
    %v290 = vld [vmem:[#allocation3 + $0x638] sm:$0xff]
    %v291 = vld [vmem:[#allocation3 + $0x640] sm:$0xff]
    %v292 = vld [vmem:[#allocation3 + $0x648] sm:$0xff]
    %v293 = vld [vmem:[#allocation3 + $0x650] sm:$0xff]
    %v294 = vld [vmem:[#allocation3 + $0x658] sm:$0xff]
    %v295 = vld [vmem:[#allocation3 + $0x660] sm:$0xff]
    %v296 = vld [vmem:[#allocation3 + $0x668] sm:$0xff]
    %v297 = vld [vmem:[#allocation3 + $0x670] sm:$0xff]
    %v298 = vld [vmem:[#allocation3 + $0x678] sm:$0xff]
    %v299 = vld [vmem:[#allocation3 + $0x680] sm:$0xff]
    %v300 = vld [vmem:[#allocation3 + $0x688] sm:$0xff]
    %v301 = vld [vmem:[#allocation3 + $0x690] sm:$0xff]
    %v302 = vld [vmem:[#allocation3 + $0x698] sm:$0xff]
    %v303 = vld [vmem:[#allocation3 + $0x6a0] sm:$0xff]
    %v304 = vld [vmem:[#allocation3 + $0x6a8] sm:$0xff]
    %v305 = vld [vmem:[#allocation3 + $0x6b0] sm:$0xff]
    %v306 = vld [vmem:[#allocation3 + $0x6b8] sm:$0xff]
    %v307 = vld [vmem:[#allocation3 + $0x6c0] sm:$0xff]
    %v308 = vld [vmem:[#allocation3 + $0x6c8] sm:$0xff]
    %v309 = vld [vmem:[#allocation3 + $0x6d0] sm:$0xff]
    %v310 = vld [vmem:[#allocation3 + $0x6d8] sm:$0xff]
    %v311 = vld [vmem:[#allocation3 + $0x6e0] sm:$0xff]
    %v312 = vld [vmem:[#allocation3 + $0x6e8] sm:$0xff]
    %v313 = vld [vmem:[#allocation3 + $0x6f0] sm:$0xff]
    %v314 = vld [vmem:[#allocation3 + $0x6f8] sm:$0xff]
    %v315 = vld [vmem:[#allocation3 + $0x700] sm:$0xff]
    %v316 = vld [vmem:[#allocation3 + $0x708] sm:$0xff]
    %v317 = vld [vmem:[#allocation3 + $0x710] sm:$0xff]
    %v318 = vld [vmem:[#allocation3 + $0x718] sm:$0xff]
    %v319 = vld [vmem:[#allocation3 + $0x720] sm:$0xff]
    %v320 = vld [vmem:[#allocation3 + $0x728] sm:$0xff]
    %v321 = vld [vmem:[#allocation3 + $0x730] sm:$0xff]
    %v322 = vld [vmem:[#allocation3 + $0x738] sm:$0xff]
    %v323 = vld [vmem:[#allocation3 + $0x740] sm:$0xff]
    %v324 = vld [vmem:[#allocation3 + $0x748] sm:$0xff]
    %v325 = vld [vmem:[#allocation3 + $0x750] sm:$0xff]
    %v326 = vld [vmem:[#allocation3 + $0x758] sm:$0xff]
    %v327 = vld [vmem:[#allocation3 + $0x760] sm:$0xff]
    %v328 = vld [vmem:[#allocation3 + $0x768] sm:$0xff]
    %v329 = vld [vmem:[#allocation3 + $0x770] sm:$0xff]
    %v330 = vld [vmem:[#allocation3 + $0x778] sm:$0xff]
    %v331 = vld [vmem:[#allocation3 + $0x780] sm:$0xff]
    %v332 = vld [vmem:[#allocation3 + $0x788] sm:$0xff]
    %v333 = vld [vmem:[#allocation3 + $0x790] sm:$0xff]
    %v334 = vld [vmem:[#allocation3 + $0x798] sm:$0xff]
    %v335 = vld [vmem:[#allocation3 + $0x7a0] sm:$0xff]
    %v336 = vld [vmem:[#allocation3 + $0x7a8] sm:$0xff]
    %v337 = vld [vmem:[#allocation3 + $0x7b0] sm:$0xff]
    %v338 = vld [vmem:[#allocation3 + $0x7b8] sm:$0xff]
    %v339 = vld [vmem:[#allocation3 + $0x7c0] sm:$0xff]
    %v340 = vld [vmem:[#allocation3 + $0x7c8] sm:$0xff]
    %v341 = vld [vmem:[#allocation3 + $0x7d0] sm:$0xff]
    %v342 = vld [vmem:[#allocation3 + $0x7d8] sm:$0xff]
    %v343 = vld [vmem:[#allocation3 + $0x7e0] sm:$0xff]
    %v344 = vld [vmem:[#allocation3 + $0x7e8] sm:$0xff]
    %v345 = vld [vmem:[#allocation3 + $0x7f0] sm:$0xff]
    %v346 = vld [vmem:[#allocation3 + $0x7f8] sm:$0xff]
    %v347 = vld [vmem:[%s2] sm:$0xf]
    %v349 = vlaneseq
    %v350 = vshrl.u32 %v349, 7
    %v351 = vsub.s32 0, %v350
    %v352 = vrot.slane %v347, %v351
    %v353 = vlaneseq
    %v354 = vshrl.u32 %v353, 7
    %v355 = vsub.s32 1, %v354
    %v356 = vrot.slane %v347, %v355
    %v357 = vlaneseq
    %v358 = vshrl.u32 %v357, 7
    %v359 = vsub.s32 2, %v358
    %v360 = vrot.slane %v347, %v359
    %v361 = vlaneseq
    %v362 = vshrl.u32 %v361, 7
    %v363 = vsub.s32 3, %v362
    %v364 = vrot.slane %v347, %v363
    %v625 = vunpack.c.l.b16 %v91
    %v626 = vunpack.c.h.b16 %v91
    %v627 = vunpack.c.l.b16 %v92
    %v628 = vunpack.c.h.b16 %v92
    %v629 = vunpack.c.l.b16 %v93
    %v630 = vunpack.c.h.b16 %v93
    %v631 = vunpack.c.l.b16 %v94
    %v632 = vunpack.c.h.b16 %v94
    %v633 = vunpack.c.l.b16 %v95
    %v634 = vunpack.c.h.b16 %v95
    %v635 = vunpack.c.l.b16 %v96
    %v636 = vunpack.c.h.b16 %v96
    %v637 = vunpack.c.l.b16 %v97
    %v638 = vunpack.c.h.b16 %v97
    %v639 = vunpack.c.l.b16 %v98
    %v640 = vunpack.c.h.b16 %v98
    %v641 = vunpack.c.l.b16 %v99
    %v642 = vunpack.c.h.b16 %v99
    %v643 = vunpack.c.l.b16 %v100
    %v644 = vunpack.c.h.b16 %v100
    %v645 = vunpack.c.l.b16 %v101
    %v646 = vunpack.c.h.b16 %v101
    %v647 = vunpack.c.l.b16 %v102
    %v648 = vunpack.c.h.b16 %v102
    %v649 = vunpack.c.l.b16 %v103
    %v650 = vunpack.c.h.b16 %v103
    %v651 = vunpack.c.l.b16 %v104
    %v652 = vunpack.c.h.b16 %v104
    %v653 = vunpack.c.l.b16 %v105
    %v654 = vunpack.c.h.b16 %v105
    %v655 = vunpack.c.l.b16 %v106
    %v656 = vunpack.c.h.b16 %v106
    %v657 = vunpack.c.l.b16 %v107
    %v658 = vunpack.c.h.b16 %v107
    %v659 = vunpack.c.l.b16 %v108
    %v660 = vunpack.c.h.b16 %v108
    %v661 = vunpack.c.l.b16 %v109
    %v662 = vunpack.c.h.b16 %v109
    %v663 = vunpack.c.l.b16 %v110
    %v664 = vunpack.c.h.b16 %v110
    %v665 = vunpack.c.l.b16 %v111
    %v666 = vunpack.c.h.b16 %v111
    %v667 = vunpack.c.l.b16 %v112
    %v668 = vunpack.c.h.b16 %v112
    %v669 = vunpack.c.l.b16 %v113
    %v670 = vunpack.c.h.b16 %v113
    %v671 = vunpack.c.l.b16 %v114
    %v672 = vunpack.c.h.b16 %v114
    %v673 = vunpack.c.l.b16 %v115
    %v674 = vunpack.c.h.b16 %v115
    %v675 = vunpack.c.l.b16 %v116
    %v676 = vunpack.c.h.b16 %v116
    %v677 = vunpack.c.l.b16 %v117
    %v678 = vunpack.c.h.b16 %v117
    %v679 = vunpack.c.l.b16 %v118
    %v680 = vunpack.c.h.b16 %v118
    %v681 = vunpack.c.l.b16 %v119
    %v682 = vunpack.c.h.b16 %v119
    %v683 = vunpack.c.l.b16 %v120
    %v684 = vunpack.c.h.b16 %v120
    %v685 = vunpack.c.l.b16 %v121
    %v686 = vunpack.c.h.b16 %v121
    %v687 = vunpack.c.l.b16 %v122
    %v688 = vunpack.c.h.b16 %v122
    %v689 = vunpack.c.l.b16 %v123
    %v690 = vunpack.c.h.b16 %v123
    %v691 = vunpack.c.l.b16 %v124
    %v692 = vunpack.c.h.b16 %v124
    %v693 = vunpack.c.l.b16 %v125
    %v694 = vunpack.c.h.b16 %v125
    %v695 = vunpack.c.l.b16 %v126
    %v696 = vunpack.c.h.b16 %v126
    %v697 = vunpack.c.l.b16 %v127
    %v698 = vunpack.c.h.b16 %v127
    %v699 = vunpack.c.l.b16 %v128
    %v700 = vunpack.c.h.b16 %v128
    %v701 = vunpack.c.l.b16 %v129
    %v702 = vunpack.c.h.b16 %v129
    %v703 = vunpack.c.l.b16 %v130
    %v704 = vunpack.c.h.b16 %v130
    %v705 = vunpack.c.l.b16 %v131
    %v706 = vunpack.c.h.b16 %v131
    %v707 = vunpack.c.l.b16 %v132
    %v708 = vunpack.c.h.b16 %v132
    %v709 = vunpack.c.l.b16 %v133
    %v710 = vunpack.c.h.b16 %v133
    %v711 = vunpack.c.l.b16 %v134
    %v712 = vunpack.c.h.b16 %v134
    %v713 = vunpack.c.l.b16 %v135
    %v714 = vunpack.c.h.b16 %v135
    %v715 = vunpack.c.l.b16 %v136
    %v716 = vunpack.c.h.b16 %v136
    %v717 = vunpack.c.l.b16 %v137
    %v718 = vunpack.c.h.b16 %v137
    %v719 = vunpack.c.l.b16 %v138
    %v720 = vunpack.c.h.b16 %v138
    %v721 = vunpack.c.l.b16 %v139
    %v722 = vunpack.c.h.b16 %v139
    %v723 = vunpack.c.l.b16 %v140
    %v724 = vunpack.c.h.b16 %v140
    %v725 = vunpack.c.l.b16 %v141
    %v726 = vunpack.c.h.b16 %v141
    %v727 = vunpack.c.l.b16 %v142
    %v728 = vunpack.c.h.b16 %v142
    %v729 = vunpack.c.l.b16 %v143
    %v730 = vunpack.c.h.b16 %v143
    %v731 = vunpack.c.l.b16 %v144
    %v732 = vunpack.c.h.b16 %v144
    %v733 = vunpack.c.l.b16 %v145
    %v734 = vunpack.c.h.b16 %v145
    %v735 = vunpack.c.l.b16 %v146
    %v736 = vunpack.c.h.b16 %v146
    %v737 = vunpack.c.l.b16 %v147
    %v738 = vunpack.c.h.b16 %v147
    %v739 = vunpack.c.l.b16 %v148
    %v740 = vunpack.c.h.b16 %v148
    %v741 = vunpack.c.l.b16 %v149
    %v742 = vunpack.c.h.b16 %v149
    %v743 = vunpack.c.l.b16 %v150
    %v744 = vunpack.c.h.b16 %v150
    %v745 = vunpack.c.l.b16 %v151
    %v746 = vunpack.c.h.b16 %v151
    %v747 = vunpack.c.l.b16 %v152
    %v748 = vunpack.c.h.b16 %v152
    %v749 = vunpack.c.l.b16 %v153
    %v750 = vunpack.c.h.b16 %v153
    %v751 = vunpack.c.l.b16 %v154
    %v752 = vunpack.c.h.b16 %v154
    %v753 = vunpack.c.l.b16 %v155
    %v754 = vunpack.c.h.b16 %v155
    %v755 = vunpack.c.l.b16 %v156
    %v756 = vunpack.c.h.b16 %v156
    %v757 = vunpack.c.l.b16 %v157
    %v758 = vunpack.c.h.b16 %v157
    %v759 = vunpack.c.l.b16 %v158
    %v760 = vunpack.c.h.b16 %v158
    %v761 = vunpack.c.l.b16 %v159
    %v762 = vunpack.c.h.b16 %v159
    %v763 = vunpack.c.l.b16 %v160
    %v764 = vunpack.c.h.b16 %v160
    %v765 = vunpack.c.l.b16 %v161
    %v766 = vunpack.c.h.b16 %v161
    %v767 = vunpack.c.l.b16 %v162
    %v768 = vunpack.c.h.b16 %v162
    %v769 = vunpack.c.l.b16 %v163
    %v770 = vunpack.c.h.b16 %v163
    %v771 = vunpack.c.l.b16 %v164
    %v772 = vunpack.c.h.b16 %v164
    %v773 = vunpack.c.l.b16 %v165
    %v774 = vunpack.c.h.b16 %v165
    %v775 = vunpack.c.l.b16 %v166
    %v776 = vunpack.c.h.b16 %v166
    %v777 = vunpack.c.l.b16 %v167
    %v778 = vunpack.c.h.b16 %v167
    %v779 = vunpack.c.l.b16 %v168
    %v780 = vunpack.c.h.b16 %v168
    %v781 = vunpack.c.l.b16 %v169
    %v782 = vunpack.c.h.b16 %v169
    %v783 = vunpack.c.l.b16 %v170
    %v784 = vunpack.c.h.b16 %v170
    %v785 = vunpack.c.l.b16 %v171
    %v786 = vunpack.c.h.b16 %v171
    %v787 = vunpack.c.l.b16 %v172
    %v788 = vunpack.c.h.b16 %v172
    %v789 = vunpack.c.l.b16 %v173
    %v790 = vunpack.c.h.b16 %v173
    %v791 = vunpack.c.l.b16 %v174
    %v792 = vunpack.c.h.b16 %v174
    %v793 = vunpack.c.l.b16 %v175
    %v794 = vunpack.c.h.b16 %v175
    %v795 = vunpack.c.l.b16 %v176
    %v796 = vunpack.c.h.b16 %v176
    %v797 = vunpack.c.l.b16 %v177
    %v798 = vunpack.c.h.b16 %v177
    %v799 = vunpack.c.l.b16 %v178
    %v800 = vunpack.c.h.b16 %v178
    %v801 = vunpack.c.l.b16 %v179
    %v802 = vunpack.c.h.b16 %v179
    %v803 = vunpack.c.l.b16 %v180
    %v804 = vunpack.c.h.b16 %v180
    %v805 = vunpack.c.l.b16 %v181
    %v806 = vunpack.c.h.b16 %v181
    %v807 = vunpack.c.l.b16 %v182
    %v808 = vunpack.c.h.b16 %v182
    %v809 = vunpack.c.l.b16 %v183
    %v810 = vunpack.c.h.b16 %v183
    %v811 = vunpack.c.l.b16 %v184
    %v812 = vunpack.c.h.b16 %v184
    %v813 = vunpack.c.l.b16 %v185
    %v814 = vunpack.c.h.b16 %v185
    %v815 = vunpack.c.l.b16 %v186
    %v816 = vunpack.c.h.b16 %v186
    %v817 = vunpack.c.l.b16 %v187
    %v818 = vunpack.c.h.b16 %v187
    %v819 = vunpack.c.l.b16 %v188
    %v820 = vunpack.c.h.b16 %v188
    %v821 = vunpack.c.l.b16 %v189
    %v822 = vunpack.c.h.b16 %v189
    %v823 = vunpack.c.l.b16 %v190
    %v824 = vunpack.c.h.b16 %v190
    %v825 = vunpack.c.l.b16 %v191
    %v826 = vunpack.c.h.b16 %v191
    %v827 = vunpack.c.l.b16 %v192
    %v828 = vunpack.c.h.b16 %v192
    %v829 = vunpack.c.l.b16 %v193
    %v830 = vunpack.c.h.b16 %v193
    %v831 = vunpack.c.l.b16 %v194
    %v832 = vunpack.c.h.b16 %v194
    %v833 = vunpack.c.l.b16 %v195
    %v834 = vunpack.c.h.b16 %v195
    %v835 = vunpack.c.l.b16 %v196
    %v836 = vunpack.c.h.b16 %v196
    %v837 = vunpack.c.l.b16 %v197
    %v838 = vunpack.c.h.b16 %v197
    %v839 = vunpack.c.l.b16 %v198
    %v840 = vunpack.c.h.b16 %v198
    %v841 = vunpack.c.l.b16 %v199
    %v842 = vunpack.c.h.b16 %v199
    %v843 = vunpack.c.l.b16 %v200
    %v844 = vunpack.c.h.b16 %v200
    %v845 = vunpack.c.l.b16 %v201
    %v846 = vunpack.c.h.b16 %v201
    %v847 = vunpack.c.l.b16 %v202
    %v848 = vunpack.c.h.b16 %v202
    %v849 = vunpack.c.l.b16 %v203
    %v850 = vunpack.c.h.b16 %v203
    %v851 = vunpack.c.l.b16 %v204
    %v852 = vunpack.c.h.b16 %v204
    %v853 = vunpack.c.l.b16 %v205
    %v854 = vunpack.c.h.b16 %v205
    %v855 = vunpack.c.l.b16 %v206
    %v856 = vunpack.c.h.b16 %v206
    %v857 = vunpack.c.l.b16 %v207
    %v858 = vunpack.c.h.b16 %v207
    %v859 = vunpack.c.l.b16 %v208
    %v860 = vunpack.c.h.b16 %v208
    %v861 = vunpack.c.l.b16 %v209
    %v862 = vunpack.c.h.b16 %v209
    %v863 = vunpack.c.l.b16 %v210
    %v864 = vunpack.c.h.b16 %v210
    %v865 = vunpack.c.l.b16 %v211
    %v866 = vunpack.c.h.b16 %v211
    %v867 = vunpack.c.l.b16 %v212
    %v868 = vunpack.c.h.b16 %v212
    %v869 = vunpack.c.l.b16 %v213
    %v870 = vunpack.c.h.b16 %v213
    %v871 = vunpack.c.l.b16 %v214
    %v872 = vunpack.c.h.b16 %v214
    %v873 = vunpack.c.l.b16 %v215
    %v874 = vunpack.c.h.b16 %v215
    %v875 = vunpack.c.l.b16 %v216
    %v876 = vunpack.c.h.b16 %v216
    %v877 = vunpack.c.l.b16 %v217
    %v878 = vunpack.c.h.b16 %v217
    %v879 = vunpack.c.l.b16 %v218
    %v880 = vunpack.c.h.b16 %v218
    %v881 = vunpack.c.l.b16 %v219
    %v882 = vunpack.c.h.b16 %v219
    %v883 = vunpack.c.l.b16 %v220
    %v884 = vunpack.c.h.b16 %v220
    %v885 = vunpack.c.l.b16 %v221
    %v886 = vunpack.c.h.b16 %v221
    %v887 = vunpack.c.l.b16 %v222
    %v888 = vunpack.c.h.b16 %v222
    %v889 = vunpack.c.l.b16 %v223
    %v890 = vunpack.c.h.b16 %v223
    %v891 = vunpack.c.l.b16 %v224
    %v892 = vunpack.c.h.b16 %v224
    %v893 = vunpack.c.l.b16 %v225
    %v894 = vunpack.c.h.b16 %v225
    %v895 = vunpack.c.l.b16 %v226
    %v896 = vunpack.c.h.b16 %v226
    %v897 = vunpack.c.l.b16 %v227
    %v898 = vunpack.c.h.b16 %v227
    %v899 = vunpack.c.l.b16 %v228
    %v900 = vunpack.c.h.b16 %v228
    %v901 = vunpack.c.l.b16 %v229
    %v902 = vunpack.c.h.b16 %v229
    %v903 = vunpack.c.l.b16 %v230
    %v904 = vunpack.c.h.b16 %v230
    %v905 = vunpack.c.l.b16 %v231
    %v906 = vunpack.c.h.b16 %v231
    %v907 = vunpack.c.l.b16 %v232
    %v908 = vunpack.c.h.b16 %v232
    %v909 = vunpack.c.l.b16 %v233
    %v910 = vunpack.c.h.b16 %v233
    %v911 = vunpack.c.l.b16 %v234
    %v912 = vunpack.c.h.b16 %v234
    %v913 = vunpack.c.l.b16 %v235
    %v914 = vunpack.c.h.b16 %v235
    %v915 = vunpack.c.l.b16 %v236
    %v916 = vunpack.c.h.b16 %v236
    %v917 = vunpack.c.l.b16 %v237
    %v918 = vunpack.c.h.b16 %v237
    %v919 = vunpack.c.l.b16 %v238
    %v920 = vunpack.c.h.b16 %v238
    %v921 = vunpack.c.l.b16 %v239
    %v922 = vunpack.c.h.b16 %v239
    %v923 = vunpack.c.l.b16 %v240
    %v924 = vunpack.c.h.b16 %v240
    %v925 = vunpack.c.l.b16 %v241
    %v926 = vunpack.c.h.b16 %v241
    %v927 = vunpack.c.l.b16 %v242
    %v928 = vunpack.c.h.b16 %v242
    %v929 = vunpack.c.l.b16 %v243
    %v930 = vunpack.c.h.b16 %v243
    %v931 = vunpack.c.l.b16 %v244
    %v932 = vunpack.c.h.b16 %v244
    %v933 = vunpack.c.l.b16 %v245
    %v934 = vunpack.c.h.b16 %v245
    %v935 = vunpack.c.l.b16 %v246
    %v936 = vunpack.c.h.b16 %v246
    %v937 = vunpack.c.l.b16 %v247
    %v938 = vunpack.c.h.b16 %v247
    %v939 = vunpack.c.l.b16 %v248
    %v940 = vunpack.c.h.b16 %v248
    %v941 = vunpack.c.l.b16 %v249
    %v942 = vunpack.c.h.b16 %v249
    %v943 = vunpack.c.l.b16 %v250
    %v944 = vunpack.c.h.b16 %v250
    %v945 = vunpack.c.l.b16 %v251
    %v946 = vunpack.c.h.b16 %v251
    %v947 = vunpack.c.l.b16 %v252
    %v948 = vunpack.c.h.b16 %v252
    %v949 = vunpack.c.l.b16 %v253
    %v950 = vunpack.c.h.b16 %v253
    %v951 = vunpack.c.l.b16 %v254
    %v952 = vunpack.c.h.b16 %v254
    %v953 = vunpack.c.l.b16 %v255
    %v954 = vunpack.c.h.b16 %v255
    %v955 = vunpack.c.l.b16 %v256
    %v956 = vunpack.c.h.b16 %v256
    %v957 = vunpack.c.l.b16 %v257
    %v958 = vunpack.c.h.b16 %v257
    %v959 = vunpack.c.l.b16 %v258
    %v960 = vunpack.c.h.b16 %v258
    %v961 = vunpack.c.l.b16 %v259
    %v962 = vunpack.c.h.b16 %v259
    %v963 = vunpack.c.l.b16 %v260
    %v964 = vunpack.c.h.b16 %v260
    %v965 = vunpack.c.l.b16 %v261
    %v966 = vunpack.c.h.b16 %v261
    %v967 = vunpack.c.l.b16 %v262
    %v968 = vunpack.c.h.b16 %v262
    %v969 = vunpack.c.l.b16 %v263
    %v970 = vunpack.c.h.b16 %v263
    %v971 = vunpack.c.l.b16 %v264
    %v972 = vunpack.c.h.b16 %v264
    %v973 = vunpack.c.l.b16 %v265
    %v974 = vunpack.c.h.b16 %v265
    %v975 = vunpack.c.l.b16 %v266
    %v976 = vunpack.c.h.b16 %v266
    %v977 = vunpack.c.l.b16 %v267
    %v978 = vunpack.c.h.b16 %v267
    %v979 = vunpack.c.l.b16 %v268
    %v980 = vunpack.c.h.b16 %v268
    %v981 = vunpack.c.l.b16 %v269
    %v982 = vunpack.c.h.b16 %v269
    %v983 = vunpack.c.l.b16 %v270
    %v984 = vunpack.c.h.b16 %v270
    %v985 = vunpack.c.l.b16 %v271
    %v986 = vunpack.c.h.b16 %v271
    %v987 = vunpack.c.l.b16 %v272
    %v988 = vunpack.c.h.b16 %v272
    %v989 = vunpack.c.l.b16 %v273
    %v990 = vunpack.c.h.b16 %v273
    %v991 = vunpack.c.l.b16 %v274
    %v992 = vunpack.c.h.b16 %v274
    %v993 = vunpack.c.l.b16 %v275
    %v994 = vunpack.c.h.b16 %v275
    %v995 = vunpack.c.l.b16 %v276
    %v996 = vunpack.c.h.b16 %v276
    %v997 = vunpack.c.l.b16 %v277
    %v998 = vunpack.c.h.b16 %v277
    %v999 = vunpack.c.l.b16 %v278
    %v1000 = vunpack.c.h.b16 %v278
    %v1001 = vunpack.c.l.b16 %v279
    %v1002 = vunpack.c.h.b16 %v279
    %v1003 = vunpack.c.l.b16 %v280
    %v1004 = vunpack.c.h.b16 %v280
    %v1005 = vunpack.c.l.b16 %v281
    %v1006 = vunpack.c.h.b16 %v281
    %v1007 = vunpack.c.l.b16 %v282
    %v1008 = vunpack.c.h.b16 %v282
    %v1009 = vunpack.c.l.b16 %v283
    %v1010 = vunpack.c.h.b16 %v283
    %v1011 = vunpack.c.l.b16 %v284
    %v1012 = vunpack.c.h.b16 %v284
    %v1013 = vunpack.c.l.b16 %v285
    %v1014 = vunpack.c.h.b16 %v285
    %v1015 = vunpack.c.l.b16 %v286
    %v1016 = vunpack.c.h.b16 %v286
    %v1017 = vunpack.c.l.b16 %v287
    %v1018 = vunpack.c.h.b16 %v287
    %v1019 = vunpack.c.l.b16 %v288
    %v1020 = vunpack.c.h.b16 %v288
    %v1021 = vunpack.c.l.b16 %v289
    %v1022 = vunpack.c.h.b16 %v289
    %v1023 = vunpack.c.l.b16 %v290
    %v1024 = vunpack.c.h.b16 %v290
    %v1025 = vunpack.c.l.b16 %v291
    %v1026 = vunpack.c.h.b16 %v291
    %v1027 = vunpack.c.l.b16 %v292
    %v1028 = vunpack.c.h.b16 %v292
    %v1029 = vunpack.c.l.b16 %v293
    %v1030 = vunpack.c.h.b16 %v293
    %v1031 = vunpack.c.l.b16 %v294
    %v1032 = vunpack.c.h.b16 %v294
    %v1033 = vunpack.c.l.b16 %v295
    %v1034 = vunpack.c.h.b16 %v295
    %v1035 = vunpack.c.l.b16 %v296
    %v1036 = vunpack.c.h.b16 %v296
    %v1037 = vunpack.c.l.b16 %v297
    %v1038 = vunpack.c.h.b16 %v297
    %v1039 = vunpack.c.l.b16 %v298
    %v1040 = vunpack.c.h.b16 %v298
    %v1041 = vunpack.c.l.b16 %v299
    %v1042 = vunpack.c.h.b16 %v299
    %v1043 = vunpack.c.l.b16 %v300
    %v1044 = vunpack.c.h.b16 %v300
    %v1045 = vunpack.c.l.b16 %v301
    %v1046 = vunpack.c.h.b16 %v301
    %v1047 = vunpack.c.l.b16 %v302
    %v1048 = vunpack.c.h.b16 %v302
    %v1049 = vunpack.c.l.b16 %v303
    %v1050 = vunpack.c.h.b16 %v303
    %v1051 = vunpack.c.l.b16 %v304
    %v1052 = vunpack.c.h.b16 %v304
    %v1053 = vunpack.c.l.b16 %v305
    %v1054 = vunpack.c.h.b16 %v305
    %v1055 = vunpack.c.l.b16 %v306
    %v1056 = vunpack.c.h.b16 %v306
    %v1057 = vunpack.c.l.b16 %v307
    %v1058 = vunpack.c.h.b16 %v307
    %v1059 = vunpack.c.l.b16 %v308
    %v1060 = vunpack.c.h.b16 %v308
    %v1061 = vunpack.c.l.b16 %v309
    %v1062 = vunpack.c.h.b16 %v309
    %v1063 = vunpack.c.l.b16 %v310
    %v1064 = vunpack.c.h.b16 %v310
    %v1065 = vunpack.c.l.b16 %v311
    %v1066 = vunpack.c.h.b16 %v311
    %v1067 = vunpack.c.l.b16 %v312
    %v1068 = vunpack.c.h.b16 %v312
    %v1069 = vunpack.c.l.b16 %v313
    %v1070 = vunpack.c.h.b16 %v313
    %v1071 = vunpack.c.l.b16 %v314
    %v1072 = vunpack.c.h.b16 %v314
    %v1073 = vunpack.c.l.b16 %v315
    %v1074 = vunpack.c.h.b16 %v315
    %v1075 = vunpack.c.l.b16 %v316
    %v1076 = vunpack.c.h.b16 %v316
    %v1077 = vunpack.c.l.b16 %v317
    %v1078 = vunpack.c.h.b16 %v317
    %v1079 = vunpack.c.l.b16 %v318
    %v1080 = vunpack.c.h.b16 %v318
    %v1081 = vunpack.c.l.b16 %v319
    %v1082 = vunpack.c.h.b16 %v319
    %v1083 = vunpack.c.l.b16 %v320
    %v1084 = vunpack.c.h.b16 %v320
    %v1085 = vunpack.c.l.b16 %v321
    %v1086 = vunpack.c.h.b16 %v321
    %v1087 = vunpack.c.l.b16 %v322
    %v1088 = vunpack.c.h.b16 %v322
    %v1089 = vunpack.c.l.b16 %v323
    %v1090 = vunpack.c.h.b16 %v323
    %v1091 = vunpack.c.l.b16 %v324
    %v1092 = vunpack.c.h.b16 %v324
    %v1093 = vunpack.c.l.b16 %v325
    %v1094 = vunpack.c.h.b16 %v325
    %v1095 = vunpack.c.l.b16 %v326
    %v1096 = vunpack.c.h.b16 %v326
    %v1097 = vunpack.c.l.b16 %v327
    %v1098 = vunpack.c.h.b16 %v327
    %v1099 = vunpack.c.l.b16 %v328
    %v1100 = vunpack.c.h.b16 %v328
    %v1101 = vunpack.c.l.b16 %v329
    %v1102 = vunpack.c.h.b16 %v329
    %v1103 = vunpack.c.l.b16 %v330
    %v1104 = vunpack.c.h.b16 %v330
    %v1105 = vunpack.c.l.b16 %v331
    %v1106 = vunpack.c.h.b16 %v331
    %v1107 = vunpack.c.l.b16 %v332
    %v1108 = vunpack.c.h.b16 %v332
    %v1109 = vunpack.c.l.b16 %v333
    %v1110 = vunpack.c.h.b16 %v333
    %v1111 = vunpack.c.l.b16 %v334
    %v1112 = vunpack.c.h.b16 %v334
    %v1113 = vunpack.c.l.b16 %v335
    %v1114 = vunpack.c.h.b16 %v335
    %v1115 = vunpack.c.l.b16 %v336
    %v1116 = vunpack.c.h.b16 %v336
    %v1117 = vunpack.c.l.b16 %v337
    %v1118 = vunpack.c.h.b16 %v337
    %v1119 = vunpack.c.l.b16 %v338
    %v1120 = vunpack.c.h.b16 %v338
    %v1121 = vunpack.c.l.b16 %v339
    %v1122 = vunpack.c.h.b16 %v339
    %v1123 = vunpack.c.l.b16 %v340
    %v1124 = vunpack.c.h.b16 %v340
    %v1125 = vunpack.c.l.b16 %v341
    %v1126 = vunpack.c.h.b16 %v341
    %v1127 = vunpack.c.l.b16 %v342
    %v1128 = vunpack.c.h.b16 %v342
    %v1129 = vunpack.c.l.b16 %v343
    %v1130 = vunpack.c.h.b16 %v343
    %v1131 = vunpack.c.l.b16 %v344
    %v1132 = vunpack.c.h.b16 %v344
    %v1133 = vunpack.c.l.b16 %v345
    %v1134 = vunpack.c.h.b16 %v345
    %v1135 = vunpack.c.l.b16 %v346
    %v1136 = vunpack.c.h.b16 %v346
    %v1137 = vpack.c.b16 %v629, %v625
    %v1138 = vpack.c.b16 %v630, %v626
    %v1139 = vpack.c.b16 %v631, %v627
    %v1140 = vpack.c.b16 %v632, %v628
    %v1141 = vpack.c.b16 %v637, %v633
    %v1142 = vpack.c.b16 %v638, %v634
    %v1143 = vpack.c.b16 %v639, %v635
    %v1144 = vpack.c.b16 %v640, %v636
    %v1145 = vpack.c.b16 %v645, %v641
    %v1146 = vpack.c.b16 %v646, %v642
    %v1147 = vpack.c.b16 %v647, %v643
    %v1148 = vpack.c.b16 %v648, %v644
    %v1149 = vpack.c.b16 %v653, %v649
    %v1150 = vpack.c.b16 %v654, %v650
    %v1151 = vpack.c.b16 %v655, %v651
    %v1152 = vpack.c.b16 %v656, %v652
    %v1153 = vpack.c.b16 %v661, %v657
    %v1154 = vpack.c.b16 %v662, %v658
    %v1155 = vpack.c.b16 %v663, %v659
    %v1156 = vpack.c.b16 %v664, %v660
    %v1157 = vpack.c.b16 %v669, %v665
    %v1158 = vpack.c.b16 %v670, %v666
    %v1159 = vpack.c.b16 %v671, %v667
    %v1160 = vpack.c.b16 %v672, %v668
    %v1161 = vpack.c.b16 %v677, %v673
    %v1162 = vpack.c.b16 %v678, %v674
    %v1163 = vpack.c.b16 %v679, %v675
    %v1164 = vpack.c.b16 %v680, %v676
    %v1165 = vpack.c.b16 %v685, %v681
    %v1166 = vpack.c.b16 %v686, %v682
    %v1167 = vpack.c.b16 %v687, %v683
    %v1168 = vpack.c.b16 %v688, %v684
    %v1169 = vpack.c.b16 %v693, %v689
    %v1170 = vpack.c.b16 %v694, %v690
    %v1171 = vpack.c.b16 %v695, %v691
    %v1172 = vpack.c.b16 %v696, %v692
    %v1173 = vpack.c.b16 %v701, %v697
    %v1174 = vpack.c.b16 %v702, %v698
    %v1175 = vpack.c.b16 %v703, %v699
    %v1176 = vpack.c.b16 %v704, %v700
    %v1177 = vpack.c.b16 %v709, %v705
    %v1178 = vpack.c.b16 %v710, %v706
    %v1179 = vpack.c.b16 %v711, %v707
    %v1180 = vpack.c.b16 %v712, %v708
    %v1181 = vpack.c.b16 %v717, %v713
    %v1182 = vpack.c.b16 %v718, %v714
    %v1183 = vpack.c.b16 %v719, %v715
    %v1184 = vpack.c.b16 %v720, %v716
    %v1185 = vpack.c.b16 %v725, %v721
    %v1186 = vpack.c.b16 %v726, %v722
    %v1187 = vpack.c.b16 %v727, %v723
    %v1188 = vpack.c.b16 %v728, %v724
    %v1189 = vpack.c.b16 %v733, %v729
    %v1190 = vpack.c.b16 %v734, %v730
    %v1191 = vpack.c.b16 %v735, %v731
    %v1192 = vpack.c.b16 %v736, %v732
    %v1193 = vpack.c.b16 %v741, %v737
    %v1194 = vpack.c.b16 %v742, %v738
    %v1195 = vpack.c.b16 %v743, %v739
    %v1196 = vpack.c.b16 %v744, %v740
    %v1197 = vpack.c.b16 %v749, %v745
    %v1198 = vpack.c.b16 %v750, %v746
    %v1199 = vpack.c.b16 %v751, %v747
    %v1200 = vpack.c.b16 %v752, %v748
    %v1201 = vpack.c.b16 %v757, %v753
    %v1202 = vpack.c.b16 %v758, %v754
    %v1203 = vpack.c.b16 %v759, %v755
    %v1204 = vpack.c.b16 %v760, %v756
    %v1205 = vpack.c.b16 %v765, %v761
    %v1206 = vpack.c.b16 %v766, %v762
    %v1207 = vpack.c.b16 %v767, %v763
    %v1208 = vpack.c.b16 %v768, %v764
    %v1209 = vpack.c.b16 %v773, %v769
    %v1210 = vpack.c.b16 %v774, %v770
    %v1211 = vpack.c.b16 %v775, %v771
    %v1212 = vpack.c.b16 %v776, %v772
    %v1213 = vpack.c.b16 %v781, %v777
    %v1214 = vpack.c.b16 %v782, %v778
    %v1215 = vpack.c.b16 %v783, %v779
    %v1216 = vpack.c.b16 %v784, %v780
    %v1217 = vpack.c.b16 %v789, %v785
    %v1218 = vpack.c.b16 %v790, %v786
    %v1219 = vpack.c.b16 %v791, %v787
    %v1220 = vpack.c.b16 %v792, %v788
    %v1221 = vpack.c.b16 %v797, %v793
    %v1222 = vpack.c.b16 %v798, %v794
    %v1223 = vpack.c.b16 %v799, %v795
    %v1224 = vpack.c.b16 %v800, %v796
    %v1225 = vpack.c.b16 %v805, %v801
    %v1226 = vpack.c.b16 %v806, %v802
    %v1227 = vpack.c.b16 %v807, %v803
    %v1228 = vpack.c.b16 %v808, %v804
    %v1229 = vpack.c.b16 %v813, %v809
    %v1230 = vpack.c.b16 %v814, %v810
    %v1231 = vpack.c.b16 %v815, %v811
    %v1232 = vpack.c.b16 %v816, %v812
    %v1233 = vpack.c.b16 %v821, %v817
    %v1234 = vpack.c.b16 %v822, %v818
    %v1235 = vpack.c.b16 %v823, %v819
    %v1236 = vpack.c.b16 %v824, %v820
    %v1237 = vpack.c.b16 %v829, %v825
    %v1238 = vpack.c.b16 %v830, %v826
    %v1239 = vpack.c.b16 %v831, %v827
    %v1240 = vpack.c.b16 %v832, %v828
    %v1241 = vpack.c.b16 %v837, %v833
    %v1242 = vpack.c.b16 %v838, %v834
    %v1243 = vpack.c.b16 %v839, %v835
    %v1244 = vpack.c.b16 %v840, %v836
    %v1245 = vpack.c.b16 %v845, %v841
    %v1246 = vpack.c.b16 %v846, %v842
    %v1247 = vpack.c.b16 %v847, %v843
    %v1248 = vpack.c.b16 %v848, %v844
    %v1249 = vpack.c.b16 %v853, %v849
    %v1250 = vpack.c.b16 %v854, %v850
    %v1251 = vpack.c.b16 %v855, %v851
    %v1252 = vpack.c.b16 %v856, %v852
    %v1253 = vpack.c.b16 %v861, %v857
    %v1254 = vpack.c.b16 %v862, %v858
    %v1255 = vpack.c.b16 %v863, %v859
    %v1256 = vpack.c.b16 %v864, %v860
    %v1257 = vpack.c.b16 %v869, %v865
    %v1258 = vpack.c.b16 %v870, %v866
    %v1259 = vpack.c.b16 %v871, %v867
    %v1260 = vpack.c.b16 %v872, %v868
    %v1261 = vpack.c.b16 %v877, %v873
    %v1262 = vpack.c.b16 %v878, %v874
    %v1263 = vpack.c.b16 %v879, %v875
    %v1264 = vpack.c.b16 %v880, %v876
    %v1265 = vpack.c.b16 %v885, %v881
    %v1266 = vpack.c.b16 %v886, %v882
    %v1267 = vpack.c.b16 %v887, %v883
    %v1268 = vpack.c.b16 %v888, %v884
    %v1269 = vpack.c.b16 %v893, %v889
    %v1270 = vpack.c.b16 %v894, %v890
    %v1271 = vpack.c.b16 %v895, %v891
    %v1272 = vpack.c.b16 %v896, %v892
    %v1273 = vpack.c.b16 %v901, %v897
    %v1274 = vpack.c.b16 %v902, %v898
    %v1275 = vpack.c.b16 %v903, %v899
    %v1276 = vpack.c.b16 %v904, %v900
    %v1277 = vpack.c.b16 %v909, %v905
    %v1278 = vpack.c.b16 %v910, %v906
    %v1279 = vpack.c.b16 %v911, %v907
    %v1280 = vpack.c.b16 %v912, %v908
    %v1281 = vpack.c.b16 %v917, %v913
    %v1282 = vpack.c.b16 %v918, %v914
    %v1283 = vpack.c.b16 %v919, %v915
    %v1284 = vpack.c.b16 %v920, %v916
    %v1285 = vpack.c.b16 %v925, %v921
    %v1286 = vpack.c.b16 %v926, %v922
    %v1287 = vpack.c.b16 %v927, %v923
    %v1288 = vpack.c.b16 %v928, %v924
    %v1289 = vpack.c.b16 %v933, %v929
    %v1290 = vpack.c.b16 %v934, %v930
    %v1291 = vpack.c.b16 %v935, %v931
    %v1292 = vpack.c.b16 %v936, %v932
    %v1293 = vpack.c.b16 %v941, %v937
    %v1294 = vpack.c.b16 %v942, %v938
    %v1295 = vpack.c.b16 %v943, %v939
    %v1296 = vpack.c.b16 %v944, %v940
    %v1297 = vpack.c.b16 %v949, %v945
    %v1298 = vpack.c.b16 %v950, %v946
    %v1299 = vpack.c.b16 %v951, %v947
    %v1300 = vpack.c.b16 %v952, %v948
    %v1301 = vpack.c.b16 %v957, %v953
    %v1302 = vpack.c.b16 %v958, %v954
    %v1303 = vpack.c.b16 %v959, %v955
    %v1304 = vpack.c.b16 %v960, %v956
    %v1305 = vpack.c.b16 %v965, %v961
    %v1306 = vpack.c.b16 %v966, %v962
    %v1307 = vpack.c.b16 %v967, %v963
    %v1308 = vpack.c.b16 %v968, %v964
    %v1309 = vpack.c.b16 %v973, %v969
    %v1310 = vpack.c.b16 %v974, %v970
    %v1311 = vpack.c.b16 %v975, %v971
    %v1312 = vpack.c.b16 %v976, %v972
    %v1313 = vpack.c.b16 %v981, %v977
    %v1314 = vpack.c.b16 %v982, %v978
    %v1315 = vpack.c.b16 %v983, %v979
    %v1316 = vpack.c.b16 %v984, %v980
    %v1317 = vpack.c.b16 %v989, %v985
    %v1318 = vpack.c.b16 %v990, %v986
    %v1319 = vpack.c.b16 %v991, %v987
    %v1320 = vpack.c.b16 %v992, %v988
    %v1321 = vpack.c.b16 %v997, %v993
    %v1322 = vpack.c.b16 %v998, %v994
    %v1323 = vpack.c.b16 %v999, %v995
    %v1324 = vpack.c.b16 %v1000, %v996
    %v1325 = vpack.c.b16 %v1005, %v1001
    %v1326 = vpack.c.b16 %v1006, %v1002
    %v1327 = vpack.c.b16 %v1007, %v1003
    %v1328 = vpack.c.b16 %v1008, %v1004
    %v1329 = vpack.c.b16 %v1013, %v1009
    %v1330 = vpack.c.b16 %v1014, %v1010
    %v1331 = vpack.c.b16 %v1015, %v1011
    %v1332 = vpack.c.b16 %v1016, %v1012
    %v1333 = vpack.c.b16 %v1021, %v1017
    %v1334 = vpack.c.b16 %v1022, %v1018
    %v1335 = vpack.c.b16 %v1023, %v1019
    %v1336 = vpack.c.b16 %v1024, %v1020
    %v1337 = vpack.c.b16 %v1029, %v1025
    %v1338 = vpack.c.b16 %v1030, %v1026
    %v1339 = vpack.c.b16 %v1031, %v1027
    %v1340 = vpack.c.b16 %v1032, %v1028
    %v1341 = vpack.c.b16 %v1037, %v1033
    %v1342 = vpack.c.b16 %v1038, %v1034
    %v1343 = vpack.c.b16 %v1039, %v1035
    %v1344 = vpack.c.b16 %v1040, %v1036
    %v1345 = vpack.c.b16 %v1045, %v1041
    %v1346 = vpack.c.b16 %v1046, %v1042
    %v1347 = vpack.c.b16 %v1047, %v1043
    %v1348 = vpack.c.b16 %v1048, %v1044
    %v1349 = vpack.c.b16 %v1053, %v1049
    %v1350 = vpack.c.b16 %v1054, %v1050
    %v1351 = vpack.c.b16 %v1055, %v1051
    %v1352 = vpack.c.b16 %v1056, %v1052
    %v1353 = vpack.c.b16 %v1061, %v1057
    %v1354 = vpack.c.b16 %v1062, %v1058
    %v1355 = vpack.c.b16 %v1063, %v1059
    %v1356 = vpack.c.b16 %v1064, %v1060
    %v1357 = vpack.c.b16 %v1069, %v1065
    %v1358 = vpack.c.b16 %v1070, %v1066
    %v1359 = vpack.c.b16 %v1071, %v1067
    %v1360 = vpack.c.b16 %v1072, %v1068
    %v1361 = vpack.c.b16 %v1077, %v1073
    %v1362 = vpack.c.b16 %v1078, %v1074
    %v1363 = vpack.c.b16 %v1079, %v1075
    %v1364 = vpack.c.b16 %v1080, %v1076
    %v1365 = vpack.c.b16 %v1085, %v1081
    %v1366 = vpack.c.b16 %v1086, %v1082
    %v1367 = vpack.c.b16 %v1087, %v1083
    %v1368 = vpack.c.b16 %v1088, %v1084
    %v1369 = vpack.c.b16 %v1093, %v1089
    %v1370 = vpack.c.b16 %v1094, %v1090
    %v1371 = vpack.c.b16 %v1095, %v1091
    %v1372 = vpack.c.b16 %v1096, %v1092
    %v1373 = vpack.c.b16 %v1101, %v1097
    %v1374 = vpack.c.b16 %v1102, %v1098
    %v1375 = vpack.c.b16 %v1103, %v1099
    %v1376 = vpack.c.b16 %v1104, %v1100
    %v1377 = vpack.c.b16 %v1109, %v1105
    %v1378 = vpack.c.b16 %v1110, %v1106
    %v1379 = vpack.c.b16 %v1111, %v1107
    %v1380 = vpack.c.b16 %v1112, %v1108
    %v1381 = vpack.c.b16 %v1117, %v1113
    %v1382 = vpack.c.b16 %v1118, %v1114
    %v1383 = vpack.c.b16 %v1119, %v1115
    %v1384 = vpack.c.b16 %v1120, %v1116
    %v1385 = vpack.c.b16 %v1125, %v1121
    %v1386 = vpack.c.b16 %v1126, %v1122
    %v1387 = vpack.c.b16 %v1127, %v1123
    %v1388 = vpack.c.b16 %v1128, %v1124
    %v1389 = vpack.c.b16 %v1133, %v1129
    %v1390 = vpack.c.b16 %v1134, %v1130
    %v1391 = vpack.c.b16 %v1135, %v1131
    %v1392 = vpack.c.b16 %v1136, %v1132
    %1649 = vmatprep.subr.bf16.mxu0 %v1166
    %1650 = vmatpush1.bf16.msra.mxu0 %v1165
    %1651 = vmatprep.subr.bf16.mxu0 %v1162
    %1652 = vmatpush1.bf16.msra.mxu0 %v1161
    %1653 = vmatprep.subr.bf16.mxu0 %v1158
    %1654 = vmatpush1.bf16.msra.mxu0 %v1157
    %1655 = vmatprep.subr.bf16.mxu0 %v1154
    %1656 = vmatpush1.bf16.msra.mxu0 %v1153
    %1657 = vmatprep.subr.bf16.mxu0 %v1150
    %1658 = vmatpush1.bf16.msra.mxu0 %v1149
    %1659 = vmatprep.subr.bf16.mxu0 %v1146
    %1660 = vmatpush1.bf16.msra.mxu0 %v1145
    %1661 = vmatprep.subr.bf16.mxu0 %v1142
    %1662 = vmatpush1.bf16.msra.mxu0 %v1141
    %1663 = vmatprep.subr.bf16.mxu0 %v1138
    %1664 = vmatpush1.bf16.msra.mxu0 %v1137
    %1665 = vmatprep.subr.bf16.mxu0 %v1198
    %1666 = vmatpush2.bf16.msra.mxu0 %v1197
    %1667 = vmatprep.subr.bf16.mxu0 %v1194
    %1668 = vmatpush2.bf16.msra.mxu0 %v1193
    %1669 = vmatprep.subr.bf16.mxu0 %v1190
    %1670 = vmatpush2.bf16.msra.mxu0 %v1189
    %1671 = vmatprep.subr.bf16.mxu0 %v1186
    %1672 = vmatpush2.bf16.msra.mxu0 %v1185
    %1673 = vmatprep.subr.bf16.mxu0 %v1182
    %1674 = vmatpush2.bf16.msra.mxu0 %v1181
    %1675 = vmatprep.subr.bf16.mxu0 %v1178
    %1676 = vmatpush2.bf16.msra.mxu0 %v1177
    %1677 = vmatprep.subr.bf16.mxu0 %v1174
    %1678 = vmatpush2.bf16.msra.mxu0 %v1173
    %1679 = vmatprep.subr.bf16.mxu0 %v1170
    %1680 = vmatpush2.bf16.msra.mxu0 %v1169
    %1681 = vmatprep.mubr.bf16.mxu0 %v84
    %1682 = vmatmul.mubr.bf16.gmra.mxu0 %v83
    %v1683 = vpop.f32.mrf.mxu0
    %v1684 = vadd.f32 %v352, %v1683
    %v1685 = vpop.f32.mrf.mxu0
    %v1686 = vadd.f32 %v356, %v1685
    %v1687 = vpop.f32.mrf.mxu0
    %v1688 = vpop.f32.mrf.mxu0
    %1689 = vdwg.mxu0
    %1690 = vmatprep.subr.bf16.mxu0 %v1230
    %1691 = vmatpush1.bf16.msra.mxu0 %v1229
    %1692 = vmatprep.subr.bf16.mxu0 %v1226
    %1693 = vmatpush1.bf16.msra.mxu0 %v1225
    %1694 = vmatprep.subr.bf16.mxu0 %v1222
    %1695 = vmatpush1.bf16.msra.mxu0 %v1221
    %1696 = vmatprep.subr.bf16.mxu0 %v1218
    %1697 = vmatpush1.bf16.msra.mxu0 %v1217
    %1698 = vmatprep.subr.bf16.mxu0 %v1214
    %1699 = vmatpush1.bf16.msra.mxu0 %v1213
    %1700 = vmatprep.subr.bf16.mxu0 %v1210
    %1701 = vmatpush1.bf16.msra.mxu0 %v1209
    %1702 = vmatprep.subr.bf16.mxu0 %v1206
    %1703 = vmatpush1.bf16.msra.mxu0 %v1205
    %1704 = vmatprep.subr.bf16.mxu0 %v1202
    %1705 = vmatpush1.bf16.msra.mxu0 %v1201
    %1706 = vmatprep.subr.bf16.mxu0 %v1262
    %1707 = vmatpush2.bf16.msra.mxu0 %v1261
    %1708 = vmatprep.subr.bf16.mxu0 %v1258
    %1709 = vmatpush2.bf16.msra.mxu0 %v1257
    %1710 = vmatprep.subr.bf16.mxu0 %v1254
    %1711 = vmatpush2.bf16.msra.mxu0 %v1253
    %1712 = vmatprep.subr.bf16.mxu0 %v1250
    %1713 = vmatpush2.bf16.msra.mxu0 %v1249
    %1714 = vmatprep.subr.bf16.mxu0 %v1246
    %1715 = vmatpush2.bf16.msra.mxu0 %v1245
    %1716 = vmatprep.subr.bf16.mxu0 %v1242
    %1717 = vmatpush2.bf16.msra.mxu0 %v1241
    %1718 = vmatprep.subr.bf16.mxu0 %v1238
    %1719 = vmatpush2.bf16.msra.mxu0 %v1237
    %1720 = vmatprep.subr.bf16.mxu0 %v1234
    %1721 = vmatpush2.bf16.msra.mxu0 %v1233
    %1722 = vmatprep.mubr.bf16.mxu0 %v86
    %1723 = vmatmul.mubr.bf16.gmra.mxu0 %v85
    %v1724 = vpop.f32.mrf.mxu0
    %v1725 = vadd.f32 %v1684, %v1724
    %v1726 = vpop.f32.mrf.mxu0
    %v1727 = vadd.f32 %v1686, %v1726
    %v1728 = vpop.f32.mrf.mxu0
    %v1729 = vpop.f32.mrf.mxu0
    %1730 = vdwg.mxu0
    %1731 = vmatprep.subr.bf16.mxu0 %v1294
    %1732 = vmatpush1.bf16.msra.mxu0 %v1293
    %1733 = vmatprep.subr.bf16.mxu0 %v1290
    %1734 = vmatpush1.bf16.msra.mxu0 %v1289
    %1735 = vmatprep.subr.bf16.mxu0 %v1286
    %1736 = vmatpush1.bf16.msra.mxu0 %v1285
    %1737 = vmatprep.subr.bf16.mxu0 %v1282
    %1738 = vmatpush1.bf16.msra.mxu0 %v1281
    %1739 = vmatprep.subr.bf16.mxu0 %v1278
    %1740 = vmatpush1.bf16.msra.mxu0 %v1277
    %1741 = vmatprep.subr.bf16.mxu0 %v1274
    %1742 = vmatpush1.bf16.msra.mxu0 %v1273
    %1743 = vmatprep.subr.bf16.mxu0 %v1270
    %1744 = vmatpush1.bf16.msra.mxu0 %v1269
    %1745 = vmatprep.subr.bf16.mxu0 %v1266
    %1746 = vmatpush1.bf16.msra.mxu0 %v1265
    %1747 = vmatprep.subr.bf16.mxu0 %v1326
    %1748 = vmatpush2.bf16.msra.mxu0 %v1325
    %1749 = vmatprep.subr.bf16.mxu0 %v1322
    %1750 = vmatpush2.bf16.msra.mxu0 %v1321
    %1751 = vmatprep.subr.bf16.mxu0 %v1318
    %1752 = vmatpush2.bf16.msra.mxu0 %v1317
    %1753 = vmatprep.subr.bf16.mxu0 %v1314
    %1754 = vmatpush2.bf16.msra.mxu0 %v1313
    %1755 = vmatprep.subr.bf16.mxu0 %v1310
    %1756 = vmatpush2.bf16.msra.mxu0 %v1309
    %1757 = vmatprep.subr.bf16.mxu0 %v1306
    %1758 = vmatpush2.bf16.msra.mxu0 %v1305
    %1759 = vmatprep.subr.bf16.mxu0 %v1302
    %1760 = vmatpush2.bf16.msra.mxu0 %v1301
    %1761 = vmatprep.subr.bf16.mxu0 %v1298
    %1762 = vmatpush2.bf16.msra.mxu0 %v1297
    %1763 = vmatprep.mubr.bf16.mxu0 %v88
    %1764 = vmatmul.mubr.bf16.gmra.mxu0 %v87
    %v1765 = vpop.f32.mrf.mxu0
    %v1766 = vadd.f32 %v1725, %v1765
    %v1767 = vpop.f32.mrf.mxu0
    %v1768 = vadd.f32 %v1727, %v1767
    %v1769 = vpop.f32.mrf.mxu0
    %v1770 = vpop.f32.mrf.mxu0
    %1771 = vdwg.mxu0
    %1772 = vmatprep.subr.bf16.mxu0 %v1358
    %1773 = vmatpush1.bf16.msra.mxu0 %v1357
    %1774 = vmatprep.subr.bf16.mxu0 %v1354
    %1775 = vmatpush1.bf16.msra.mxu0 %v1353
    %1776 = vmatprep.subr.bf16.mxu0 %v1350
    %1777 = vmatpush1.bf16.msra.mxu0 %v1349
    %1778 = vmatprep.subr.bf16.mxu0 %v1346
    %1779 = vmatpush1.bf16.msra.mxu0 %v1345
    %1780 = vmatprep.subr.bf16.mxu0 %v1342
    %1781 = vmatpush1.bf16.msra.mxu0 %v1341
    %1782 = vmatprep.subr.bf16.mxu0 %v1338
    %1783 = vmatpush1.bf16.msra.mxu0 %v1337
    %1784 = vmatprep.subr.bf16.mxu0 %v1334
    %1785 = vmatpush1.bf16.msra.mxu0 %v1333
    %1786 = vmatprep.subr.bf16.mxu0 %v1330
    %1787 = vmatpush1.bf16.msra.mxu0 %v1329
    %1788 = vmatprep.subr.bf16.mxu0 %v1390
    %1789 = vmatpush2.bf16.msra.mxu0 %v1389
    %1790 = vmatprep.subr.bf16.mxu0 %v1386
    %1791 = vmatpush2.bf16.msra.mxu0 %v1385
    %1792 = vmatprep.subr.bf16.mxu0 %v1382
    %1793 = vmatpush2.bf16.msra.mxu0 %v1381
    %1794 = vmatprep.subr.bf16.mxu0 %v1378
    %1795 = vmatpush2.bf16.msra.mxu0 %v1377
    %1796 = vmatprep.subr.bf16.mxu0 %v1374
    %1797 = vmatpush2.bf16.msra.mxu0 %v1373
    %1798 = vmatprep.subr.bf16.mxu0 %v1370
    %1799 = vmatpush2.bf16.msra.mxu0 %v1369
    %1800 = vmatprep.subr.bf16.mxu0 %v1366
    %1801 = vmatpush2.bf16.msra.mxu0 %v1365
    %1802 = vmatprep.subr.bf16.mxu0 %v1362
    %1803 = vmatpush2.bf16.msra.mxu0 %v1361
    %1804 = vmatprep.mubr.bf16.mxu0 %v90
    %1805 = vmatmul.mubr.bf16.gmra.mxu0 %v89
    %v1806 = vpop.f32.mrf.mxu0
    %v1807 = vadd.f32 %v1766, %v1806
    %v1808 = vpop.f32.mrf.mxu0
    %v1809 = vadd.f32 %v1768, %v1808
    %v1810 = vpop.f32.mrf.mxu0
    %v1811 = vpop.f32.mrf.mxu0
    %1812 = vdwg.mxu0
    %1813 = vmatprep.subr.bf16.mxu0 %v1168
    %1814 = vmatpush1.bf16.msra.mxu0 %v1167
    %1815 = vmatprep.subr.bf16.mxu0 %v1164
    %1816 = vmatpush1.bf16.msra.mxu0 %v1163
    %1817 = vmatprep.subr.bf16.mxu0 %v1160
    %1818 = vmatpush1.bf16.msra.mxu0 %v1159
    %1819 = vmatprep.subr.bf16.mxu0 %v1156
    %1820 = vmatpush1.bf16.msra.mxu0 %v1155
    %1821 = vmatprep.subr.bf16.mxu0 %v1152
    %1822 = vmatpush1.bf16.msra.mxu0 %v1151
    %1823 = vmatprep.subr.bf16.mxu0 %v1148
    %1824 = vmatpush1.bf16.msra.mxu0 %v1147
    %1825 = vmatprep.subr.bf16.mxu0 %v1144
    %1826 = vmatpush1.bf16.msra.mxu0 %v1143
    %1827 = vmatprep.subr.bf16.mxu0 %v1140
    %1828 = vmatpush1.bf16.msra.mxu0 %v1139
    %1829 = vmatprep.subr.bf16.mxu0 %v1200
    %1830 = vmatpush2.bf16.msra.mxu0 %v1199
    %1831 = vmatprep.subr.bf16.mxu0 %v1196
    %1832 = vmatpush2.bf16.msra.mxu0 %v1195
    %1833 = vmatprep.subr.bf16.mxu0 %v1192
    %1834 = vmatpush2.bf16.msra.mxu0 %v1191
    %1835 = vmatprep.subr.bf16.mxu0 %v1188
    %1836 = vmatpush2.bf16.msra.mxu0 %v1187
    %1837 = vmatprep.subr.bf16.mxu0 %v1184
    %1838 = vmatpush2.bf16.msra.mxu0 %v1183
    %1839 = vmatprep.subr.bf16.mxu0 %v1180
    %1840 = vmatpush2.bf16.msra.mxu0 %v1179
    %1841 = vmatprep.subr.bf16.mxu0 %v1176
    %1842 = vmatpush2.bf16.msra.mxu0 %v1175
    %1843 = vmatprep.subr.bf16.mxu0 %v1172
    %1844 = vmatpush2.bf16.msra.mxu0 %v1171
    %1845 = vmatprep.mubr.bf16.mxu0 %v84
    %1846 = vmatmul.mubr.bf16.gmra.mxu0 %v83
    %v1847 = vpop.f32.mrf.mxu0
    %v1848 = vadd.f32 %v360, %v1847
    %v1849 = vpop.f32.mrf.mxu0
    %v1850 = vadd.f32 %v364, %v1849
    %v1851 = vpop.f32.mrf.mxu0
    %v1852 = vpop.f32.mrf.mxu0
    %1853 = vdwg.mxu0
    %1854 = vmatprep.subr.bf16.mxu0 %v1232
    %1855 = vmatpush1.bf16.msra.mxu0 %v1231
    %1856 = vmatprep.subr.bf16.mxu0 %v1228
    %1857 = vmatpush1.bf16.msra.mxu0 %v1227
    %1858 = vmatprep.subr.bf16.mxu0 %v1224
    %1859 = vmatpush1.bf16.msra.mxu0 %v1223
    %1860 = vmatprep.subr.bf16.mxu0 %v1220
    %1861 = vmatpush1.bf16.msra.mxu0 %v1219
    %1862 = vmatprep.subr.bf16.mxu0 %v1216
    %1863 = vmatpush1.bf16.msra.mxu0 %v1215
    %1864 = vmatprep.subr.bf16.mxu0 %v1212
    %1865 = vmatpush1.bf16.msra.mxu0 %v1211
    %1866 = vmatprep.subr.bf16.mxu0 %v1208
    %1867 = vmatpush1.bf16.msra.mxu0 %v1207
    %1868 = vmatprep.subr.bf16.mxu0 %v1204
    %1869 = vmatpush1.bf16.msra.mxu0 %v1203
    %1870 = vmatprep.subr.bf16.mxu0 %v1264
    %1871 = vmatpush2.bf16.msra.mxu0 %v1263
    %1872 = vmatprep.subr.bf16.mxu0 %v1260
    %1873 = vmatpush2.bf16.msra.mxu0 %v1259
    %1874 = vmatprep.subr.bf16.mxu0 %v1256
    %1875 = vmatpush2.bf16.msra.mxu0 %v1255
    %1876 = vmatprep.subr.bf16.mxu0 %v1252
    %1877 = vmatpush2.bf16.msra.mxu0 %v1251
    %1878 = vmatprep.subr.bf16.mxu0 %v1248
    %1879 = vmatpush2.bf16.msra.mxu0 %v1247
    %1880 = vmatprep.subr.bf16.mxu0 %v1244
    %1881 = vmatpush2.bf16.msra.mxu0 %v1243
    %1882 = vmatprep.subr.bf16.mxu0 %v1240
    %1883 = vmatpush2.bf16.msra.mxu0 %v1239
    %1884 = vmatprep.subr.bf16.mxu0 %v1236
    %1885 = vmatpush2.bf16.msra.mxu0 %v1235
    %1886 = vmatprep.mubr.bf16.mxu0 %v86
    %1887 = vmatmul.mubr.bf16.gmra.mxu0 %v85
    %v1888 = vpop.f32.mrf.mxu0
    %v1889 = vadd.f32 %v1848, %v1888
    %v1890 = vpop.f32.mrf.mxu0
    %v1891 = vadd.f32 %v1850, %v1890
    %v1892 = vpop.f32.mrf.mxu0
    %v1893 = vpop.f32.mrf.mxu0
    %1894 = vdwg.mxu0
    %1895 = vmatprep.subr.bf16.mxu0 %v1296
    %1896 = vmatpush1.bf16.msra.mxu0 %v1295
    %1897 = vmatprep.subr.bf16.mxu0 %v1292
    %1898 = vmatpush1.bf16.msra.mxu0 %v1291
    %1899 = vmatprep.subr.bf16.mxu0 %v1288
    %1900 = vmatpush1.bf16.msra.mxu0 %v1287
    %1901 = vmatprep.subr.bf16.mxu0 %v1284
    %1902 = vmatpush1.bf16.msra.mxu0 %v1283
    %1903 = vmatprep.subr.bf16.mxu0 %v1280
    %1904 = vmatpush1.bf16.msra.mxu0 %v1279
    %1905 = vmatprep.subr.bf16.mxu0 %v1276
    %1906 = vmatpush1.bf16.msra.mxu0 %v1275
    %1907 = vmatprep.subr.bf16.mxu0 %v1272
    %1908 = vmatpush1.bf16.msra.mxu0 %v1271
    %1909 = vmatprep.subr.bf16.mxu0 %v1268
    %1910 = vmatpush1.bf16.msra.mxu0 %v1267
    %1911 = vmatprep.subr.bf16.mxu0 %v1328
    %1912 = vmatpush2.bf16.msra.mxu0 %v1327
    %1913 = vmatprep.subr.bf16.mxu0 %v1324
    %1914 = vmatpush2.bf16.msra.mxu0 %v1323
    %1915 = vmatprep.subr.bf16.mxu0 %v1320
    %1916 = vmatpush2.bf16.msra.mxu0 %v1319
    %1917 = vmatprep.subr.bf16.mxu0 %v1316
    %1918 = vmatpush2.bf16.msra.mxu0 %v1315
    %1919 = vmatprep.subr.bf16.mxu0 %v1312
    %1920 = vmatpush2.bf16.msra.mxu0 %v1311
    %1921 = vmatprep.subr.bf16.mxu0 %v1308
    %1922 = vmatpush2.bf16.msra.mxu0 %v1307
    %1923 = vmatprep.subr.bf16.mxu0 %v1304
    %1924 = vmatpush2.bf16.msra.mxu0 %v1303
    %1925 = vmatprep.subr.bf16.mxu0 %v1300
    %1926 = vmatpush2.bf16.msra.mxu0 %v1299
    %1927 = vmatprep.mubr.bf16.mxu0 %v88
    %1928 = vmatmul.mubr.bf16.gmra.mxu0 %v87
    %v1929 = vpop.f32.mrf.mxu0
    %v1930 = vadd.f32 %v1889, %v1929
    %v1931 = vpop.f32.mrf.mxu0
    %v1932 = vadd.f32 %v1891, %v1931
    %v1933 = vpop.f32.mrf.mxu0
    %v1934 = vpop.f32.mrf.mxu0
    %1935 = vdwg.mxu0
    %1936 = vmatprep.subr.bf16.mxu0 %v1360
    %1937 = vmatpush1.bf16.msra.mxu0 %v1359
    %1938 = vmatprep.subr.bf16.mxu0 %v1356
    %1939 = vmatpush1.bf16.msra.mxu0 %v1355
    %1940 = vmatprep.subr.bf16.mxu0 %v1352
    %1941 = vmatpush1.bf16.msra.mxu0 %v1351
    %1942 = vmatprep.subr.bf16.mxu0 %v1348
    %1943 = vmatpush1.bf16.msra.mxu0 %v1347
    %1944 = vmatprep.subr.bf16.mxu0 %v1344
    %1945 = vmatpush1.bf16.msra.mxu0 %v1343
    %1946 = vmatprep.subr.bf16.mxu0 %v1340
    %1947 = vmatpush1.bf16.msra.mxu0 %v1339
    %1948 = vmatprep.subr.bf16.mxu0 %v1336
    %1949 = vmatpush1.bf16.msra.mxu0 %v1335
    %1950 = vmatprep.subr.bf16.mxu0 %v1332
    %1951 = vmatpush1.bf16.msra.mxu0 %v1331
    %1952 = vmatprep.subr.bf16.mxu0 %v1392
    %1953 = vmatpush2.bf16.msra.mxu0 %v1391
    %1954 = vmatprep.subr.bf16.mxu0 %v1388
    %1955 = vmatpush2.bf16.msra.mxu0 %v1387
    %1956 = vmatprep.subr.bf16.mxu0 %v1384
    %1957 = vmatpush2.bf16.msra.mxu0 %v1383
    %1958 = vmatprep.subr.bf16.mxu0 %v1380
    %1959 = vmatpush2.bf16.msra.mxu0 %v1379
    %1960 = vmatprep.subr.bf16.mxu0 %v1376
    %1961 = vmatpush2.bf16.msra.mxu0 %v1375
    %1962 = vmatprep.subr.bf16.mxu0 %v1372
    %1963 = vmatpush2.bf16.msra.mxu0 %v1371
    %1964 = vmatprep.subr.bf16.mxu0 %v1368
    %1965 = vmatpush2.bf16.msra.mxu0 %v1367
    %1966 = vmatprep.subr.bf16.mxu0 %v1364
    %1967 = vmatpush2.bf16.msra.mxu0 %v1363
    %1968 = vmatprep.mubr.bf16.mxu0 %v90
    %1969 = vmatmul.mubr.bf16.gmra.mxu0 %v89
    %v1970 = vpop.f32.mrf.mxu0
    %v1971 = vadd.f32 %v1930, %v1970
    %v1972 = vpop.f32.mrf.mxu0
    %v1973 = vadd.f32 %v1932, %v1972
    %v1974 = vpop.f32.mrf.mxu0
    %v1975 = vpop.f32.mrf.mxu0
    %1976 = vdwg.mxu0
    %v1977 = vmax.f32 %v1807, 0.0
    %v1978 = vmax.f32 %v1809, 0.0
    %v1979 = vmax.f32 %v1971, 0.0
    %v1980 = vmax.f32 %v1973, 0.0
    %v1981 = vpack.c.bf16 %v1977, %v1977
    %v1982 = vpack.c.bf16 %v1978, %v1978
    %v1983 = vpack.c.bf16 %v1979, %v1979
    %v1984 = vpack.c.bf16 %v1980, %v1980
    %v1985 = vld [vmem:[#allocation5] sm:$0xff]
    %v1986 = vld [vmem:[#allocation5 + $0x8] sm:$0xff]
    %v1987 = vld [vmem:[#allocation5 + $0x10] sm:$0xff]
    %v1988 = vld [vmem:[#allocation5 + $0x18] sm:$0xff]
    %v1989 = vld [vmem:[#allocation5 + $0x20] sm:$0xff]
    %v1990 = vld [vmem:[#allocation5 + $0x28] sm:$0xff]
    %v1991 = vld [vmem:[#allocation5 + $0x30] sm:$0xff]
    %v1992 = vld [vmem:[#allocation5 + $0x38] sm:$0xff]
    %v1993 = vld [vmem:[#allocation5 + $0x40] sm:$0xff]
    %v1994 = vld [vmem:[#allocation5 + $0x48] sm:$0xff]
    %v1995 = vld [vmem:[#allocation5 + $0x50] sm:$0xff]
    %v1996 = vld [vmem:[#allocation5 + $0x58] sm:$0xff]
    %v1997 = vld [vmem:[#allocation5 + $0x60] sm:$0xff]
    %v1998 = vld [vmem:[#allocation5 + $0x68] sm:$0xff]
    %v1999 = vld [vmem:[#allocation5 + $0x70] sm:$0xff]
    %v2000 = vld [vmem:[#allocation5 + $0x78] sm:$0xff]
    %v2001 = vld [vmem:[#allocation5 + $0x80] sm:$0xff]
    %v2002 = vld [vmem:[#allocation5 + $0x88] sm:$0xff]
    %v2003 = vld [vmem:[#allocation5 + $0x90] sm:$0xff]
    %v2004 = vld [vmem:[#allocation5 + $0x98] sm:$0xff]
    %v2005 = vld [vmem:[#allocation5 + $0xa0] sm:$0xff]
    %v2006 = vld [vmem:[#allocation5 + $0xa8] sm:$0xff]
    %v2007 = vld [vmem:[#allocation5 + $0xb0] sm:$0xff]
    %v2008 = vld [vmem:[#allocation5 + $0xb8] sm:$0xff]
    %v2009 = vld [vmem:[#allocation5 + $0xc0] sm:$0xff]
    %v2010 = vld [vmem:[#allocation5 + $0xc8] sm:$0xff]
    %v2011 = vld [vmem:[#allocation5 + $0xd0] sm:$0xff]
    %v2012 = vld [vmem:[#allocation5 + $0xd8] sm:$0xff]
    %v2013 = vld [vmem:[#allocation5 + $0xe0] sm:$0xff]
    %v2014 = vld [vmem:[#allocation5 + $0xe8] sm:$0xff]
    %v2015 = vld [vmem:[#allocation5 + $0xf0] sm:$0xff]
    %v2016 = vld [vmem:[#allocation5 + $0xf8] sm:$0xff]
    %v2017 = vld [vmem:[#allocation5 + $0x100] sm:$0xff]
    %v2018 = vld [vmem:[#allocation5 + $0x108] sm:$0xff]
    %v2019 = vld [vmem:[#allocation5 + $0x110] sm:$0xff]
    %v2020 = vld [vmem:[#allocation5 + $0x118] sm:$0xff]
    %v2021 = vld [vmem:[#allocation5 + $0x120] sm:$0xff]
    %v2022 = vld [vmem:[#allocation5 + $0x128] sm:$0xff]
    %v2023 = vld [vmem:[#allocation5 + $0x130] sm:$0xff]
    %v2024 = vld [vmem:[#allocation5 + $0x138] sm:$0xff]
    %v2025 = vld [vmem:[#allocation5 + $0x140] sm:$0xff]
    %v2026 = vld [vmem:[#allocation5 + $0x148] sm:$0xff]
    %v2027 = vld [vmem:[#allocation5 + $0x150] sm:$0xff]
    %v2028 = vld [vmem:[#allocation5 + $0x158] sm:$0xff]
    %v2029 = vld [vmem:[#allocation5 + $0x160] sm:$0xff]
    %v2030 = vld [vmem:[#allocation5 + $0x168] sm:$0xff]
    %v2031 = vld [vmem:[#allocation5 + $0x170] sm:$0xff]
    %v2032 = vld [vmem:[#allocation5 + $0x178] sm:$0xff]
    %v2033 = vld [vmem:[#allocation5 + $0x180] sm:$0xff]
    %v2034 = vld [vmem:[#allocation5 + $0x188] sm:$0xff]
    %v2035 = vld [vmem:[#allocation5 + $0x190] sm:$0xff]
    %v2036 = vld [vmem:[#allocation5 + $0x198] sm:$0xff]
    %v2037 = vld [vmem:[#allocation5 + $0x1a0] sm:$0xff]
    %v2038 = vld [vmem:[#allocation5 + $0x1a8] sm:$0xff]
    %v2039 = vld [vmem:[#allocation5 + $0x1b0] sm:$0xff]
    %v2040 = vld [vmem:[#allocation5 + $0x1b8] sm:$0xff]
    %v2041 = vld [vmem:[#allocation5 + $0x1c0] sm:$0xff]
    %v2042 = vld [vmem:[#allocation5 + $0x1c8] sm:$0xff]
    %v2043 = vld [vmem:[#allocation5 + $0x1d0] sm:$0xff]
    %v2044 = vld [vmem:[#allocation5 + $0x1d8] sm:$0xff]
    %v2045 = vld [vmem:[#allocation5 + $0x1e0] sm:$0xff]
    %v2046 = vld [vmem:[#allocation5 + $0x1e8] sm:$0xff]
    %v2047 = vld [vmem:[#allocation5 + $0x1f0] sm:$0xff]
    %v2048 = vld [vmem:[#allocation5 + $0x1f8] sm:$0xff]
    %v2049 = vld [vmem:[%s4] sm:$0x3]
    %v2051 = vlaneseq
    %v2052 = vshrl.u32 %v2051, 7
    %v2053 = vsub.s32 0, %v2052
    %v2054 = vrot.slane %v2049, %v2053
    %v2055 = vlaneseq
    %v2056 = vshrl.u32 %v2055, 7
    %v2057 = vsub.s32 1, %v2056
    %v2058 = vrot.slane %v2049, %v2057
    %v2125 = vunpack.c.l.b16 %v1985
    %v2126 = vunpack.c.h.b16 %v1985
    %v2127 = vunpack.c.l.b16 %v1986
    %v2128 = vunpack.c.h.b16 %v1986
    %v2129 = vunpack.c.l.b16 %v1987
    %v2130 = vunpack.c.h.b16 %v1987
    %v2131 = vunpack.c.l.b16 %v1988
    %v2132 = vunpack.c.h.b16 %v1988
    %v2133 = vunpack.c.l.b16 %v1989
    %v2134 = vunpack.c.h.b16 %v1989
    %v2135 = vunpack.c.l.b16 %v1990
    %v2136 = vunpack.c.h.b16 %v1990
    %v2137 = vunpack.c.l.b16 %v1991
    %v2138 = vunpack.c.h.b16 %v1991
    %v2139 = vunpack.c.l.b16 %v1992
    %v2140 = vunpack.c.h.b16 %v1992
    %v2141 = vunpack.c.l.b16 %v1993
    %v2142 = vunpack.c.h.b16 %v1993
    %v2143 = vunpack.c.l.b16 %v1994
    %v2144 = vunpack.c.h.b16 %v1994
    %v2145 = vunpack.c.l.b16 %v1995
    %v2146 = vunpack.c.h.b16 %v1995
    %v2147 = vunpack.c.l.b16 %v1996
    %v2148 = vunpack.c.h.b16 %v1996
    %v2149 = vunpack.c.l.b16 %v1997
    %v2150 = vunpack.c.h.b16 %v1997
    %v2151 = vunpack.c.l.b16 %v1998
    %v2152 = vunpack.c.h.b16 %v1998
    %v2153 = vunpack.c.l.b16 %v1999
    %v2154 = vunpack.c.h.b16 %v1999
    %v2155 = vunpack.c.l.b16 %v2000
    %v2156 = vunpack.c.h.b16 %v2000
    %v2157 = vunpack.c.l.b16 %v2001
    %v2158 = vunpack.c.h.b16 %v2001
    %v2159 = vunpack.c.l.b16 %v2002
    %v2160 = vunpack.c.h.b16 %v2002
    %v2161 = vunpack.c.l.b16 %v2003
    %v2162 = vunpack.c.h.b16 %v2003
    %v2163 = vunpack.c.l.b16 %v2004
    %v2164 = vunpack.c.h.b16 %v2004
    %v2165 = vunpack.c.l.b16 %v2005
    %v2166 = vunpack.c.h.b16 %v2005
    %v2167 = vunpack.c.l.b16 %v2006
    %v2168 = vunpack.c.h.b16 %v2006
    %v2169 = vunpack.c.l.b16 %v2007
    %v2170 = vunpack.c.h.b16 %v2007
    %v2171 = vunpack.c.l.b16 %v2008
    %v2172 = vunpack.c.h.b16 %v2008
    %v2173 = vunpack.c.l.b16 %v2009
    %v2174 = vunpack.c.h.b16 %v2009
    %v2175 = vunpack.c.l.b16 %v2010
    %v2176 = vunpack.c.h.b16 %v2010
    %v2177 = vunpack.c.l.b16 %v2011
    %v2178 = vunpack.c.h.b16 %v2011
    %v2179 = vunpack.c.l.b16 %v2012
    %v2180 = vunpack.c.h.b16 %v2012
    %v2181 = vunpack.c.l.b16 %v2013
    %v2182 = vunpack.c.h.b16 %v2013
    %v2183 = vunpack.c.l.b16 %v2014
    %v2184 = vunpack.c.h.b16 %v2014
    %v2185 = vunpack.c.l.b16 %v2015
    %v2186 = vunpack.c.h.b16 %v2015
    %v2187 = vunpack.c.l.b16 %v2016
    %v2188 = vunpack.c.h.b16 %v2016
    %v2189 = vunpack.c.l.b16 %v2017
    %v2190 = vunpack.c.h.b16 %v2017
    %v2191 = vunpack.c.l.b16 %v2018
    %v2192 = vunpack.c.h.b16 %v2018
    %v2193 = vunpack.c.l.b16 %v2019
    %v2194 = vunpack.c.h.b16 %v2019
    %v2195 = vunpack.c.l.b16 %v2020
    %v2196 = vunpack.c.h.b16 %v2020
    %v2197 = vunpack.c.l.b16 %v2021
    %v2198 = vunpack.c.h.b16 %v2021
    %v2199 = vunpack.c.l.b16 %v2022
    %v2200 = vunpack.c.h.b16 %v2022
    %v2201 = vunpack.c.l.b16 %v2023
    %v2202 = vunpack.c.h.b16 %v2023
    %v2203 = vunpack.c.l.b16 %v2024
    %v2204 = vunpack.c.h.b16 %v2024
    %v2205 = vunpack.c.l.b16 %v2025
    %v2206 = vunpack.c.h.b16 %v2025
    %v2207 = vunpack.c.l.b16 %v2026
    %v2208 = vunpack.c.h.b16 %v2026
    %v2209 = vunpack.c.l.b16 %v2027
    %v2210 = vunpack.c.h.b16 %v2027
    %v2211 = vunpack.c.l.b16 %v2028
    %v2212 = vunpack.c.h.b16 %v2028
    %v2213 = vunpack.c.l.b16 %v2029
    %v2214 = vunpack.c.h.b16 %v2029
    %v2215 = vunpack.c.l.b16 %v2030
    %v2216 = vunpack.c.h.b16 %v2030
    %v2217 = vunpack.c.l.b16 %v2031
    %v2218 = vunpack.c.h.b16 %v2031
    %v2219 = vunpack.c.l.b16 %v2032
    %v2220 = vunpack.c.h.b16 %v2032
    %v2221 = vunpack.c.l.b16 %v2033
    %v2222 = vunpack.c.h.b16 %v2033
    %v2223 = vunpack.c.l.b16 %v2034
    %v2224 = vunpack.c.h.b16 %v2034
    %v2225 = vunpack.c.l.b16 %v2035
    %v2226 = vunpack.c.h.b16 %v2035
    %v2227 = vunpack.c.l.b16 %v2036
    %v2228 = vunpack.c.h.b16 %v2036
    %v2229 = vunpack.c.l.b16 %v2037
    %v2230 = vunpack.c.h.b16 %v2037
    %v2231 = vunpack.c.l.b16 %v2038
    %v2232 = vunpack.c.h.b16 %v2038
    %v2233 = vunpack.c.l.b16 %v2039
    %v2234 = vunpack.c.h.b16 %v2039
    %v2235 = vunpack.c.l.b16 %v2040
    %v2236 = vunpack.c.h.b16 %v2040
    %v2237 = vunpack.c.l.b16 %v2041
    %v2238 = vunpack.c.h.b16 %v2041
    %v2239 = vunpack.c.l.b16 %v2042
    %v2240 = vunpack.c.h.b16 %v2042
    %v2241 = vunpack.c.l.b16 %v2043
    %v2242 = vunpack.c.h.b16 %v2043
    %v2243 = vunpack.c.l.b16 %v2044
    %v2244 = vunpack.c.h.b16 %v2044
    %v2245 = vunpack.c.l.b16 %v2045
    %v2246 = vunpack.c.h.b16 %v2045
    %v2247 = vunpack.c.l.b16 %v2046
    %v2248 = vunpack.c.h.b16 %v2046
    %v2249 = vunpack.c.l.b16 %v2047
    %v2250 = vunpack.c.h.b16 %v2047
    %v2251 = vunpack.c.l.b16 %v2048
    %v2252 = vunpack.c.h.b16 %v2048
    %v2253 = vpack.c.b16 %v2127, %v2125
    %v2254 = vpack.c.b16 %v2128, %v2126
    %v2255 = vpack.c.b16 %v2131, %v2129
    %v2256 = vpack.c.b16 %v2132, %v2130
    %v2257 = vpack.c.b16 %v2135, %v2133
    %v2258 = vpack.c.b16 %v2136, %v2134
    %v2259 = vpack.c.b16 %v2139, %v2137
    %v2260 = vpack.c.b16 %v2140, %v2138
    %v2261 = vpack.c.b16 %v2143, %v2141
    %v2262 = vpack.c.b16 %v2144, %v2142
    %v2263 = vpack.c.b16 %v2147, %v2145
    %v2264 = vpack.c.b16 %v2148, %v2146
    %v2265 = vpack.c.b16 %v2151, %v2149
    %v2266 = vpack.c.b16 %v2152, %v2150
    %v2267 = vpack.c.b16 %v2155, %v2153
    %v2268 = vpack.c.b16 %v2156, %v2154
    %v2269 = vpack.c.b16 %v2159, %v2157
    %v2270 = vpack.c.b16 %v2160, %v2158
    %v2271 = vpack.c.b16 %v2163, %v2161
    %v2272 = vpack.c.b16 %v2164, %v2162
    %v2273 = vpack.c.b16 %v2167, %v2165
    %v2274 = vpack.c.b16 %v2168, %v2166
    %v2275 = vpack.c.b16 %v2171, %v2169
    %v2276 = vpack.c.b16 %v2172, %v2170
    %v2277 = vpack.c.b16 %v2175, %v2173
    %v2278 = vpack.c.b16 %v2176, %v2174
    %v2279 = vpack.c.b16 %v2179, %v2177
    %v2280 = vpack.c.b16 %v2180, %v2178
    %v2281 = vpack.c.b16 %v2183, %v2181
    %v2282 = vpack.c.b16 %v2184, %v2182
    %v2283 = vpack.c.b16 %v2187, %v2185
    %v2284 = vpack.c.b16 %v2188, %v2186
    %v2285 = vpack.c.b16 %v2191, %v2189
    %v2286 = vpack.c.b16 %v2192, %v2190
    %v2287 = vpack.c.b16 %v2195, %v2193
    %v2288 = vpack.c.b16 %v2196, %v2194
    %v2289 = vpack.c.b16 %v2199, %v2197
    %v2290 = vpack.c.b16 %v2200, %v2198
    %v2291 = vpack.c.b16 %v2203, %v2201
    %v2292 = vpack.c.b16 %v2204, %v2202
    %v2293 = vpack.c.b16 %v2207, %v2205
    %v2294 = vpack.c.b16 %v2208, %v2206
    %v2295 = vpack.c.b16 %v2211, %v2209
    %v2296 = vpack.c.b16 %v2212, %v2210
    %v2297 = vpack.c.b16 %v2215, %v2213
    %v2298 = vpack.c.b16 %v2216, %v2214
    %v2299 = vpack.c.b16 %v2219, %v2217
    %v2300 = vpack.c.b16 %v2220, %v2218
    %v2301 = vpack.c.b16 %v2223, %v2221
    %v2302 = vpack.c.b16 %v2224, %v2222
    %v2303 = vpack.c.b16 %v2227, %v2225
    %v2304 = vpack.c.b16 %v2228, %v2226
    %v2305 = vpack.c.b16 %v2231, %v2229
    %v2306 = vpack.c.b16 %v2232, %v2230
    %v2307 = vpack.c.b16 %v2235, %v2233
    %v2308 = vpack.c.b16 %v2236, %v2234
    %v2309 = vpack.c.b16 %v2239, %v2237
    %v2310 = vpack.c.b16 %v2240, %v2238
    %v2311 = vpack.c.b16 %v2243, %v2241
    %v2312 = vpack.c.b16 %v2244, %v2242
    %v2313 = vpack.c.b16 %v2247, %v2245
    %v2314 = vpack.c.b16 %v2248, %v2246
    %v2315 = vpack.c.b16 %v2251, %v2249
    %v2316 = vpack.c.b16 %v2252, %v2250
    %2381 = vmatprep.subr.bf16.mxu0 %v2268
    %2382 = vmatpush1.bf16.msra.mxu0 %v2267
    %2383 = vmatprep.subr.bf16.mxu0 %v2266
    %2384 = vmatpush1.bf16.msra.mxu0 %v2265
    %2385 = vmatprep.subr.bf16.mxu0 %v2264
    %2386 = vmatpush1.bf16.msra.mxu0 %v2263
    %2387 = vmatprep.subr.bf16.mxu0 %v2262
    %2388 = vmatpush1.bf16.msra.mxu0 %v2261
    %2389 = vmatprep.subr.bf16.mxu0 %v2260
    %2390 = vmatpush1.bf16.msra.mxu0 %v2259
    %2391 = vmatprep.subr.bf16.mxu0 %v2258
    %2392 = vmatpush1.bf16.msra.mxu0 %v2257
    %2393 = vmatprep.subr.bf16.mxu0 %v2256
    %2394 = vmatpush1.bf16.msra.mxu0 %v2255
    %2395 = vmatprep.subr.bf16.mxu0 %v2254
    %2396 = vmatpush1.bf16.msra.mxu0 %v2253
    %2397 = vmatprep.subr.bf16.mxu0 %v2284
    %2398 = vmatpush2.bf16.msra.mxu0 %v2283
    %2399 = vmatprep.subr.bf16.mxu0 %v2282
    %2400 = vmatpush2.bf16.msra.mxu0 %v2281
    %2401 = vmatprep.subr.bf16.mxu0 %v2280
    %2402 = vmatpush2.bf16.msra.mxu0 %v2279
    %2403 = vmatprep.subr.bf16.mxu0 %v2278
    %2404 = vmatpush2.bf16.msra.mxu0 %v2277
    %2405 = vmatprep.subr.bf16.mxu0 %v2276
    %2406 = vmatpush2.bf16.msra.mxu0 %v2275
    %2407 = vmatprep.subr.bf16.mxu0 %v2274
    %2408 = vmatpush2.bf16.msra.mxu0 %v2273
    %2409 = vmatprep.subr.bf16.mxu0 %v2272
    %2410 = vmatpush2.bf16.msra.mxu0 %v2271
    %2411 = vmatprep.subr.bf16.mxu0 %v2270
    %2412 = vmatpush2.bf16.msra.mxu0 %v2269
    %2413 = vmatprep.mubr.bf16.mxu0 %v1982
    %2414 = vmatmul.mubr.bf16.gmra.mxu0 %v1981
    %v2415 = vpop.f32.mrf.mxu0
    %v2416 = vadd.f32 %v2054, %v2415
    %v2417 = vpop.f32.mrf.mxu0
    %v2418 = vadd.f32 %v2058, %v2417
    %v2419 = vpop.f32.mrf.mxu0
    %v2420 = vpop.f32.mrf.mxu0
    %2421 = vdwg.mxu0
    %2422 = vmatprep.subr.bf16.mxu0 %v2300
    %2423 = vmatpush1.bf16.msra.mxu0 %v2299
    %2424 = vmatprep.subr.bf16.mxu0 %v2298
    %2425 = vmatpush1.bf16.msra.mxu0 %v2297
    %2426 = vmatprep.subr.bf16.mxu0 %v2296
    %2427 = vmatpush1.bf16.msra.mxu0 %v2295
    %2428 = vmatprep.subr.bf16.mxu0 %v2294
    %2429 = vmatpush1.bf16.msra.mxu0 %v2293
    %2430 = vmatprep.subr.bf16.mxu0 %v2292
    %2431 = vmatpush1.bf16.msra.mxu0 %v2291
    %2432 = vmatprep.subr.bf16.mxu0 %v2290
    %2433 = vmatpush1.bf16.msra.mxu0 %v2289
    %2434 = vmatprep.subr.bf16.mxu0 %v2288
    %2435 = vmatpush1.bf16.msra.mxu0 %v2287
    %2436 = vmatprep.subr.bf16.mxu0 %v2286
    %2437 = vmatpush1.bf16.msra.mxu0 %v2285
    %2438 = vmatprep.subr.bf16.mxu0 %v2316
    %2439 = vmatpush2.bf16.msra.mxu0 %v2315
    %2440 = vmatprep.subr.bf16.mxu0 %v2314
    %2441 = vmatpush2.bf16.msra.mxu0 %v2313
    %2442 = vmatprep.subr.bf16.mxu0 %v2312
    %2443 = vmatpush2.bf16.msra.mxu0 %v2311
    %2444 = vmatprep.subr.bf16.mxu0 %v2310
    %2445 = vmatpush2.bf16.msra.mxu0 %v2309
    %2446 = vmatprep.subr.bf16.mxu0 %v2308
    %2447 = vmatpush2.bf16.msra.mxu0 %v2307
    %2448 = vmatprep.subr.bf16.mxu0 %v2306
    %2449 = vmatpush2.bf16.msra.mxu0 %v2305
    %2450 = vmatprep.subr.bf16.mxu0 %v2304
    %2451 = vmatpush2.bf16.msra.mxu0 %v2303
    %2452 = vmatprep.subr.bf16.mxu0 %v2302
    %2453 = vmatpush2.bf16.msra.mxu0 %v2301
    %2454 = vmatprep.mubr.bf16.mxu0 %v1984
    %2455 = vmatmul.mubr.bf16.gmra.mxu0 %v1983
    %v2456 = vpop.f32.mrf.mxu0
    %v2457 = vadd.f32 %v2416, %v2456
    %v2458 = vpop.f32.mrf.mxu0
    %v2459 = vadd.f32 %v2418, %v2458
    %v2460 = vpop.f32.mrf.mxu0
    %v2461 = vpop.f32.mrf.mxu0
    %2462 = vdwg.mxu0
    %v2463 = vmax.f32 %v2457, 0.0
    %v2464 = vmax.f32 %v2459, 0.0
    %v2465 = vpack.c.bf16 %v2463, %v2463
    %v2466 = vpack.c.bf16 %v2464, %v2464
    %v2467 = vld [vmem:[%s5] sm:$0xf]
    %v2468 = vld [vmem:[%s5 + $0x4] sm:$0xf]
    %v2469 = vld [vmem:[%s5 + $0x8] sm:$0xf]
    %v2470 = vld [vmem:[%s5 + $0xc] sm:$0xf]
    %v2471 = vld [vmem:[%s5 + $0x10] sm:$0xf]
    %v2472 = vld [vmem:[%s5 + $0x14] sm:$0xf]
    %v2473 = vld [vmem:[%s5 + $0x18] sm:$0xf]
    %v2474 = vld [vmem:[%s5 + $0x1c] sm:$0xf]
    %v2475 = vld [vmem:[%s5 + $0x20] sm:$0xf]
    %v2476 = vld [vmem:[%s5 + $0x24] sm:$0xf]
    %v2477 = vld [vmem:[%s5 + $0x28] sm:$0xf]
    %v2478 = vld [vmem:[%s5 + $0x2c] sm:$0xf]
    %v2479 = vld [vmem:[%s5 + $0x30] sm:$0xf]
    %v2480 = vld [vmem:[%s5 + $0x34] sm:$0xf]
    %v2481 = vld [vmem:[%s5 + $0x38] sm:$0xf]
    %v2482 = vld [vmem:[%s5 + $0x3c] sm:$0xf]
    %v2483 = vld [vmem:[%s5 + $0x40] sm:$0xf]
    %v2484 = vld [vmem:[%s5 + $0x44] sm:$0xf]
    %v2485 = vld [vmem:[%s5 + $0x48] sm:$0xf]
    %v2486 = vld [vmem:[%s5 + $0x4c] sm:$0xf]
    %v2487 = vld [vmem:[%s5 + $0x50] sm:$0xf]
    %v2488 = vld [vmem:[%s5 + $0x54] sm:$0xf]
    %v2489 = vld [vmem:[%s5 + $0x58] sm:$0xf]
    %v2490 = vld [vmem:[%s5 + $0x5c] sm:$0xf]
    %v2491 = vld [vmem:[%s5 + $0x60] sm:$0xf]
    %v2492 = vld [vmem:[%s5 + $0x64] sm:$0xf]
    %v2493 = vld [vmem:[%s5 + $0x68] sm:$0xf]
    %v2494 = vld [vmem:[%s5 + $0x6c] sm:$0xf]
    %v2495 = vld [vmem:[%s5 + $0x70] sm:$0xf]
    %v2496 = vld [vmem:[%s5 + $0x74] sm:$0xf]
    %v2497 = vld [vmem:[%s5 + $0x78] sm:$0xf]
    %v2498 = vld [vmem:[%s5 + $0x7c] sm:$0xf]
    %v2499 = vld [vmem:[%s6] sm:$0x1]
    %v2501 = vlaneseq
    %v2502 = vshrl.u32 %v2501, 7
    %v2503 = vsub.s32 0, %v2502
    %v2504 = vrot.slane %v2499, %v2503
    %v2538 = vunpack.c.l.b16 %v2467
    %v2539 = vunpack.c.l.b16 %v2468
    %v2540 = vunpack.c.l.b16 %v2469
    %v2541 = vunpack.c.l.b16 %v2470
    %v2542 = vunpack.c.l.b16 %v2471
    %v2543 = vunpack.c.l.b16 %v2472
    %v2544 = vunpack.c.l.b16 %v2473
    %v2545 = vunpack.c.l.b16 %v2474
    %v2546 = vunpack.c.l.b16 %v2475
    %v2547 = vunpack.c.l.b16 %v2476
    %v2548 = vunpack.c.l.b16 %v2477
    %v2549 = vunpack.c.l.b16 %v2478
    %v2550 = vunpack.c.l.b16 %v2479
    %v2551 = vunpack.c.l.b16 %v2480
    %v2552 = vunpack.c.l.b16 %v2481
    %v2553 = vunpack.c.l.b16 %v2482
    %v2554 = vunpack.c.l.b16 %v2483
    %v2555 = vunpack.c.l.b16 %v2484
    %v2556 = vunpack.c.l.b16 %v2485
    %v2557 = vunpack.c.l.b16 %v2486
    %v2558 = vunpack.c.l.b16 %v2487
    %v2559 = vunpack.c.l.b16 %v2488
    %v2560 = vunpack.c.l.b16 %v2489
    %v2561 = vunpack.c.l.b16 %v2490
    %v2562 = vunpack.c.l.b16 %v2491
    %v2563 = vunpack.c.l.b16 %v2492
    %v2564 = vunpack.c.l.b16 %v2493
    %v2565 = vunpack.c.l.b16 %v2494
    %v2566 = vunpack.c.l.b16 %v2495
    %v2567 = vunpack.c.l.b16 %v2496
    %v2568 = vunpack.c.l.b16 %v2497
    %v2569 = vunpack.c.l.b16 %v2498
    %v2570 = vpack.c.b16 %v2539, %v2538
    %v2571 = vpack.c.b16 %v2541, %v2540
    %v2572 = vpack.c.b16 %v2543, %v2542
    %v2573 = vpack.c.b16 %v2545, %v2544
    %v2574 = vpack.c.b16 %v2547, %v2546
    %v2575 = vpack.c.b16 %v2549, %v2548
    %v2576 = vpack.c.b16 %v2551, %v2550
    %v2577 = vpack.c.b16 %v2553, %v2552
    %v2578 = vpack.c.b16 %v2555, %v2554
    %v2579 = vpack.c.b16 %v2557, %v2556
    %v2580 = vpack.c.b16 %v2559, %v2558
    %v2581 = vpack.c.b16 %v2561, %v2560
    %v2582 = vpack.c.b16 %v2563, %v2562
    %v2583 = vpack.c.b16 %v2565, %v2564
    %v2584 = vpack.c.b16 %v2567, %v2566
    %v2585 = vpack.c.b16 %v2569, %v2568
    %2602 = vmatprep.subr.bf16.mxu0 0
    %2603 = vmatpush1.bf16.msra.mxu0 %v2577
    %2604 = vmatprep.subr.bf16.mxu0 0
    %2605 = vmatpush1.bf16.msra.mxu0 %v2576
    %2606 = vmatprep.subr.bf16.mxu0 0
    %2607 = vmatpush1.bf16.msra.mxu0 %v2575
    %2608 = vmatprep.subr.bf16.mxu0 0
    %2609 = vmatpush1.bf16.msra.mxu0 %v2574
    %2610 = vmatprep.subr.bf16.mxu0 0
    %2611 = vmatpush1.bf16.msra.mxu0 %v2573
    %2612 = vmatprep.subr.bf16.mxu0 0
    %2613 = vmatpush1.bf16.msra.mxu0 %v2572
    %2614 = vmatprep.subr.bf16.mxu0 0
    %2615 = vmatpush1.bf16.msra.mxu0 %v2571
    %2616 = vmatprep.subr.bf16.mxu0 0
    %2617 = vmatpush1.bf16.msra.mxu0 %v2570
    %2618 = vmatprep.subr.bf16.mxu0 0
    %2619 = vmatpush2.bf16.msra.mxu0 %v2585
    %2620 = vmatprep.subr.bf16.mxu0 0
    %2621 = vmatpush2.bf16.msra.mxu0 %v2584
    %2622 = vmatprep.subr.bf16.mxu0 0
    %2623 = vmatpush2.bf16.msra.mxu0 %v2583
    %2624 = vmatprep.subr.bf16.mxu0 0
    %2625 = vmatpush2.bf16.msra.mxu0 %v2582
    %2626 = vmatprep.subr.bf16.mxu0 0
    %2627 = vmatpush2.bf16.msra.mxu0 %v2581
    %2628 = vmatprep.subr.bf16.mxu0 0
    %2629 = vmatpush2.bf16.msra.mxu0 %v2580
    %2630 = vmatprep.subr.bf16.mxu0 0
    %2631 = vmatpush2.bf16.msra.mxu0 %v2579
    %2632 = vmatprep.subr.bf16.mxu0 0
    %2633 = vmatpush2.bf16.msra.mxu0 %v2578
    %2634 = vmatprep.mubr.bf16.mxu0 %v2466
    %2635 = vmatmul.mubr.bf16.gmra.mxu0 %v2465
    %v2636 = vpop.f32.mrf.mxu0
    %v2637 = vadd.f32 %v2504, %v2636
    %v2638 = vpop.f32.mrf.mxu0
    %v2639 = vpop.f32.mrf.mxu0
    %v2640 = vpop.f32.mrf.mxu0
    %2641 = vdwg.mxu0
    %v2642 = vpack.c.bf16 %v2637, %v2637
    %v2643 = vld [vmem:[%s7] sm:$0xf]
    %v2644 = vld [vmem:[%s7 + $0x4] sm:$0xf]
    %v2645 = vld [vmem:[%s7 + $0x8] sm:$0xf]
    %v2646 = vld [vmem:[%s7 + $0xc] sm:$0xf]
    %v2647 = vld [vmem:[%s8] sm:$0x1]
    %v2649 = vlaneseq
    %v2650 = vshrl.u32 %v2649, 7
    %v2651 = vsub.s32 0, %v2650
    %v2652 = vrot.slane %v2647, %v2651
    %v2658 = vunpack.c.l.b16 %v2643
    %v2659 = vunpack.c.l.b16 %v2644
    %v2660 = vunpack.c.l.b16 %v2645
    %v2661 = vunpack.c.l.b16 %v2646
    %v2662 = vpack.c.b16 %v2659, %v2658
    %v2663 = vpack.c.b16 %v2661, %v2660
    %vm2666 = vcmask 261120
    %v2668 = vsel %vm2666, %v2642, 0
    %2670 = vmatprep.subr.bf16.mxu0 0
    %2671 = vmatpush1.bf16.msra.mxu0 0
    %2672 = vmatprep.subr.bf16.mxu0 0
    %2673 = vmatpush1.bf16.msra.mxu0 0
    %2674 = vmatprep.subr.bf16.mxu0 0
    %2675 = vmatpush1.bf16.msra.mxu0 0
    %2676 = vmatprep.subr.bf16.mxu0 0
    %2677 = vmatpush1.bf16.msra.mxu0 0
    %2678 = vmatprep.subr.bf16.mxu0 0
    %2679 = vmatpush1.bf16.msra.mxu0 0
    %2680 = vmatprep.subr.bf16.mxu0 0
    %2681 = vmatpush1.bf16.msra.mxu0 0
    %2682 = vmatprep.subr.bf16.mxu0 0
    %2683 = vmatpush1.bf16.msra.mxu0 %v2663
    %2684 = vmatprep.subr.bf16.mxu0 0
    %2685 = vmatpush1.bf16.msra.mxu0 %v2662
    %2686 = vmatprep.subr.bf16.mxu0 0
    %2687 = vmatpush2.bf16.msra.mxu0 0
    %2688 = vmatprep.subr.bf16.mxu0 0
    %2689 = vmatpush2.bf16.msra.mxu0 0
    %2690 = vmatprep.subr.bf16.mxu0 0
    %2691 = vmatpush2.bf16.msra.mxu0 0
    %2692 = vmatprep.subr.bf16.mxu0 0
    %2693 = vmatpush2.bf16.msra.mxu0 0
    %2694 = vmatprep.subr.bf16.mxu0 0
    %2695 = vmatpush2.bf16.msra.mxu0 0
    %2696 = vmatprep.subr.bf16.mxu0 0
    %2697 = vmatpush2.bf16.msra.mxu0 0
    %2698 = vmatprep.subr.bf16.mxu0 0
    %2699 = vmatpush2.bf16.msra.mxu0 0
    %2700 = vmatprep.subr.bf16.mxu0 0
    %2701 = vmatpush2.bf16.msra.mxu0 0
    %2702 = vmatprep.mubr.bf16.mxu0 0
    %2703 = vmatmul.mubr.bf16.gmra.mxu0 %v2668
    %v2704 = vpop.f32.mrf.mxu0
    %v2705 = vadd.f32 %v2652, %v2704
    %v2706 = vpop.f32.mrf.mxu0
    %v2707 = vpop.f32.mrf.mxu0
    %v2708 = vpop.f32.mrf.mxu0
    %2709 = vdwg.mxu0
    %v2710 = vtanh.pop %v2705
    %v2711 = vpack.c.bf16 %v2710, %v2710
    %v2712 = vld [vmem:[%s9] sm:$0xf]
    %v2713 = vld [vmem:[%s9 + $0x4] sm:$0xf]
    %v2714 = vld [vmem:[%s9 + $0x8] sm:$0xf]
    %v2715 = vld [vmem:[%s9 + $0xc] sm:$0xf]
    %v2716 = vld [vmem:[%s10] sm:$0x1]
    %v2718 = vlaneseq
    %v2719 = vshrl.u32 %v2718, 7
    %v2720 = vsub.s32 0, %v2719
    %v2721 = vrot.slane %v2716, %v2720
    %v2727 = vunpack.c.l.b16 %v2712
    %v2728 = vunpack.c.l.b16 %v2713
    %v2729 = vunpack.c.l.b16 %v2714
    %v2730 = vunpack.c.l.b16 %v2715
    %v2731 = vpack.c.b16 %v2728, %v2727
    %v2732 = vpack.c.b16 %v2730, %v2729
    %v2736 = vsel %vm2666, %v2711, 0
    %2738 = vmatprep.subr.bf16.mxu0 0
    %2739 = vmatpush1.bf16.msra.mxu0 0
    %2740 = vmatprep.subr.bf16.mxu0 0
    %2741 = vmatpush1.bf16.msra.mxu0 0
    %2742 = vmatprep.subr.bf16.mxu0 0
    %2743 = vmatpush1.bf16.msra.mxu0 0
    %2744 = vmatprep.subr.bf16.mxu0 0
    %2745 = vmatpush1.bf16.msra.mxu0 0
    %2746 = vmatprep.subr.bf16.mxu0 0
    %2747 = vmatpush1.bf16.msra.mxu0 0
    %2748 = vmatprep.subr.bf16.mxu0 0
    %2749 = vmatpush1.bf16.msra.mxu0 0
    %2750 = vmatprep.subr.bf16.mxu0 0
    %2751 = vmatpush1.bf16.msra.mxu0 %v2732
    %2752 = vmatprep.subr.bf16.mxu0 0
    %2753 = vmatpush1.bf16.msra.mxu0 %v2731
    %2754 = vmatprep.subr.bf16.mxu0 0
    %2755 = vmatpush2.bf16.msra.mxu0 0
    %2756 = vmatprep.subr.bf16.mxu0 0
    %2757 = vmatpush2.bf16.msra.mxu0 0
    %2758 = vmatprep.subr.bf16.mxu0 0
    %2759 = vmatpush2.bf16.msra.mxu0 0
    %2760 = vmatprep.subr.bf16.mxu0 0
    %2761 = vmatpush2.bf16.msra.mxu0 0
    %2762 = vmatprep.subr.bf16.mxu0 0
    %2763 = vmatpush2.bf16.msra.mxu0 0
    %2764 = vmatprep.subr.bf16.mxu0 0
    %2765 = vmatpush2.bf16.msra.mxu0 0
    %2766 = vmatprep.subr.bf16.mxu0 0
    %2767 = vmatpush2.bf16.msra.mxu0 0
    %2768 = vmatprep.subr.bf16.mxu0 0
    %2769 = vmatpush2.bf16.msra.mxu0 0
    %2770 = vmatprep.mubr.bf16.mxu0 0
    %2771 = vmatmul.mubr.bf16.gmra.mxu0 %v2736
    %v2772 = vpop.f32.mrf.mxu0
    %v2773 = vadd.f32 %v2721, %v2772
    %v2774 = vpop.f32.mrf.mxu0
    %v2775 = vpop.f32.mrf.mxu0
    %v2776 = vpop.f32.mrf.mxu0
    %2777 = vdwg.mxu0
    %v2778 = vtanh.pop %v2773
    %v2779 = vld [vmem:[%s11] sm:$0x1]
    %v2781 = vlaneseq
    %v2782 = vshrl.u32 %v2781, 7
    %v2783 = vsub.s32 0, %v2782
    %v2784 = vrot.slane %v2779, %v2783
    %v2786 = vmul.f32 %v2778, %v2784
    %v2787 = vsel %vm2666, %v2786, 0.0
    %2788 = vadd.xlane.f32.xlu0 %v2787
    %v2789 = vpop.xlane.xlu0 %2788
    %v2790 = vld [vmem:[#allocation2] sm:$0x1]
    %v2792 = vlaneseq
    %v2793 = vshrl.u32 %v2792, 7
    %v2794 = vsub.s32 0, %v2793
    %v2795 = vrot.slane %v2790, %v2794
    %v2797 = vadd.f32 %v2789, %v2795
    %vm2798 = vcmask 7168
    %2799 = vst.msk [vmem:[%s13] sm:$0xff] %vm2798, %v2797
    // Predicated region
    $region62: #{vae_critic_forward.1} parent=1 // pred_check
      _
    $region63: #{vae_critic_forward.1} parent=1 // pred_check_branch
      %2801 = sbr.rel (0) target = $region65
    $region64: #{vae_critic_forward.1} parent=1 // pred_region
      _
    $region65: #{vae_critic_forward.1} parent=1 // pred_fallthru
      _
    // Predicated region
    $region66: #{vae_critic_forward.1} parent=1 // pred_check
      _
    $region67: #{vae_critic_forward.1} parent=1 // pred_check_branch
      %2803 = sbr.rel (0) target = $region69
    $region68: #{vae_critic_forward.1} parent=1 // pred_region
      _
    $region69: #{vae_critic_forward.1} parent=1 // pred_fallthru
      _
    %2804 = vsyncpa [#allocation4], 1
    %2805 = vsyncpa [#allocation6], 1

</llo_original>
